<compile_context>
chip_gen: v5e
topology: v5e:2x2
jax: 0.10.0
libtpu: 0.0.40
codegen_flags: <defaults>
</compile_context>

<pallas_src>
import numpy as np
import jax
import jax.numpy as jnp
from jax.experimental import pallas as pl
from jax.experimental.pallas import tpu as pltpu


# --------------------------------------------------------------------------------------
# In-kernel helpers (pure jnp, traced inside the Pallas kernel body)
# --------------------------------------------------------------------------------------

def _silu(x):
    # SiLU via tanh (EUP op, no exp overflow): sigmoid(x) = 0.5*(tanh(x/2)+1)
    return x * (0.5 * (jnp.tanh(0.5 * x) + 1.0))


def _scalar_head_row(hidden, w2t, b2):
    # hidden: (N, H) f32 ; w2t: (1, H) bf16 ; b2: (1, 1) f32  ->  (1, N) f32 (lane-dense)
    ht = hidden.T.astype(jnp.bfloat16)                                   # (H, N)
    return jnp.dot(w2t, ht, preferred_element_type=jnp.float32) + b2


def _gather_rows(idx_col, src):
    # idx_col: (R, 1) int32 ; src: (C, D) f32  ->  (R, D) via one-hot MXU matmul (exact)
    r = idx_col.shape[0]
    c = src.shape[0]
    iota = jax.lax.broadcasted_iota(jnp.int32, (r, c), 1)
    onehot = (iota == idx_col).astype(jnp.float32)
    return jnp.dot(onehot, src, preferred_element_type=jnp.float32)


def _segment_membership(seg_row, num_segments):
    # seg_row: (1, N) int32 -> bool (S, N), memb[s, n] = (seg[n] == s)
    n = seg_row.shape[1]
    iota = jax.lax.broadcasted_iota(jnp.int32, (num_segments, n), 0)
    return iota == seg_row


def _segment_softmax_row(scores_row, memb_bool):
    # scores_row: (1, N) f32 ; memb_bool: (S, N)  -> (1, N) segment softmax (f32 math)
    memb = memb_bool.astype(jnp.float32)
    masked = jnp.where(memb_bool, scores_row, jnp.float32(-1e30))        # (S, N)
    seg_max = jnp.max(masked, axis=1, keepdims=True)                     # (S, 1)
    max_per = jnp.sum(memb * seg_max, axis=0, keepdims=True)             # (1, N)
    e = jnp.exp(scores_row - max_per)                                    # (1, N)
    seg_sum = jnp.sum(memb * e, axis=1, keepdims=True)                   # (S, 1)
    denom = jnp.sum(memb * seg_sum, axis=0, keepdims=True)               # (1, N)
    return e / denom


# --------------------------------------------------------------------------------------
# Pallas kernels
# --------------------------------------------------------------------------------------

def _stop_only_kernel(gsfc_ref, w1_ref, b1_ref, w2t_ref, b2_ref, out_ref):
    hidden = _silu(jnp.dot(gsfc_ref[...].astype(jnp.bfloat16), w1_ref[...],
                           preferred_element_type=jnp.float32) + b1_ref[...])
    out_ref[...] = _scalar_head_row(hidden, w2t_ref[...], b2_ref[...])   # (1, B)


def _fused_decoder_kernel(*refs):
    (gsfc_ref, h_focal_ref, h_partial_ref, lib_ref, lib_node_ref,
     masked_graph_idx_ref, focal_sel_idx_ref, mfbir_col_ref, mfbir_row_ref,
     focal_atom_idx_ref, next_frag_idx_ref, naai_col_ref,
     mnaabir_col_ref, mnaabir_row_ref, multihot_row_ref,
     stop_w1_ref, stop_b1_ref, stop_w2t_ref, stop_b2_ref,
     fa_w1z_ref, fa_w1e_ref, fa_b1_ref, fa_w2t_ref, fa_b2_ref,
     nf_w1z_ref, nf_w1e_ref, nf_w1f_ref, nf_b1_ref, nf_w2t_ref, nf_b2_ref,
     nfa_w1z_ref, nfa_w1e_ref, nfa_w1f_ref, nfa_w1a_ref, nfa_b1_ref, nfa_w2t_ref, nfa_b2_ref,
     bond_w1z_ref, bond_w1e_ref, bond_w1f_ref, bond_w1p_ref, bond_b1_ref, bond_w2_ref, bond_b2_ref,
     stop_out_ref, naf_out_ref, fa_sm_out_ref, nfa_sm_out_ref, bond_out_ref) = refs

    f32 = jnp.float32
    n_masked = masked_graph_idx_ref.shape[0]

    def bdot(x_f32, w_ref):
        # bf16 MXU matmul, f32 accumulation; weights are resident in VMEM for the kernel.
        return jnp.dot(x_f32.astype(jnp.bfloat16), w_ref[...], preferred_element_type=f32)

    # ---------------- stop head over ALL graphs, lane-dense (1, B) output ----------------
    gsfc = gsfc_ref[...]
    stop_hidden = _silu(bdot(gsfc, stop_w1_ref) + stop_b1_ref[...])
    stop_out_ref[...] = _scalar_head_row(stop_hidden, stop_w2t_ref[...], stop_b2_ref[...])

    # ---------------- masked gathers (one-hot MXU gathers; indices stay on device) -------
    gsfc_m = _gather_rows(masked_graph_idx_ref[...], gsfc)               # (Nm, Z)
    h_focal_m = _gather_rows(focal_sel_idx_ref[...], h_focal_ref[...])   # (Nfm, E)
    focal_atom = _gather_rows(focal_atom_idx_ref[...], h_partial_ref[...])  # (Nm, E)
    lib = lib_ref[...]                                                   # (Nlib, F)
    next_frag = _gather_rows(next_frag_idx_ref[...], lib)                # (Nm, F)
    att_feats = _gather_rows(naai_col_ref[...], lib_node_ref[...])       # (Natt, F)

    # ---------------- fragment attachment scores + segment softmax -----------------------
    # first layer is linear: project the per-graph half once (Nm rows), then gather rows.
    fa_pre_m = bdot(gsfc_m, fa_w1z_ref)                                  # (Nm, H)
    fa_pre_att = _gather_rows(mfbir_col_ref[...], fa_pre_m)              # (Nfm, H)
    fa_hidden = _silu(fa_pre_att + bdot(h_focal_m, fa_w1e_ref) + fa_b1_ref[...])
    fa_scores = _scalar_head_row(fa_hidden, fa_w2t_ref[...], fa_b2_ref[...])   # (1, Nfm)
    memb_f = _segment_membership(mfbir_row_ref[...], n_masked)           # (Nm, Nfm)
    fa_sm_out_ref[...] = _segment_softmax_row(fa_scores, memb_f)

    # ---------------- pairwise next atom/fragment logits (factorized first layer) --------
    a_lin = bdot(gsfc_m, nf_w1z_ref) + bdot(focal_atom, nf_w1e_ref)      # (Nm, H)
    b_lin = bdot(lib, nf_w1f_ref) + nf_b1_ref[...]                       # (Nlib, H)
    nf_w2t = nf_w2t_ref[...]
    nf_b2 = nf_b2_ref[...]
    for m in range(n_masked):                                            # static unroll, Nm small
        h_m = _silu(b_lin + a_lin[m:m + 1, :])                           # (Nlib, H)
        naf_out_ref[pl.ds(m, 1), :] = _scalar_head_row(h_m, nf_w2t, nf_b2)   # (1, Nlib)

    # ---------------- next fragment attachment scores + segment softmax ------------------
    nfa_base_m = (bdot(gsfc_m, nfa_w1z_ref) + bdot(focal_atom, nfa_w1e_ref)
                  + bdot(next_frag, nfa_w1f_ref))                        # (Nm, H)
    nfa_base_att = _gather_rows(mnaabir_col_ref[...], nfa_base_m)        # (Natt, H)
    nfa_hidden = _silu(nfa_base_att + bdot(att_feats, nfa_w1a_ref) + nfa_b1_ref[...])
    nfa_scores = _scalar_head_row(nfa_hidden, nfa_w2t_ref[...], nfa_b2_ref[...])  # (1, Natt)
    memb_n = _segment_membership(mnaabir_row_ref[...], n_masked)         # (Nm, Natt)
    nfa_sm_out_ref[...] = _segment_softmax_row(nfa_scores, memb_n)

    # ---------------- bond types: multihot-weighted segment mean + 4-way head ------------
    w_sel = memb_n.astype(f32) * multihot_row_ref[...]                   # (Nm, Natt)
    counts = jnp.sum(w_sel, axis=1, keepdims=True)                       # (Nm, 1)
    pooled = jnp.dot(w_sel, att_feats, preferred_element_type=f32)
    pooled = pooled / jnp.maximum(counts, 1.0)                           # (Nm, F), dim_size = Nm
    bond_hidden = _silu(bdot(gsfc_m, bond_w1z_ref) + bdot(focal_atom, bond_w1e_ref)
                        + bdot(next_frag, bond_w1f_ref) + bdot(pooled, bond_w1p_ref)
                        + bond_b1_ref[...])                              # (Nm, H)
    bond_out_ref[...] = (jnp.dot(bond_hidden.astype(jnp.bfloat16), bond_w2_ref[...],
                                 preferred_element_type=f32) + bond_b2_ref[...])   # (Nm, 4)


# --------------------------------------------------------------------------------------
# Parameter init (deterministic, synthetic); first-layer weights split per input block
# --------------------------------------------------------------------------------------

def _init_head(key, split_dims, out_dim, hidden_dim):
    in_dim = int(sum(split_dims))
    k1, k2 = jax.random.split(key)
    w1 = jax.random.normal(k1, (in_dim, hidden_dim), jnp.float32) / np.sqrt(in_dim)
    w2 = jax.random.normal(k2, (hidden_dim, out_dim), jnp.float32) / np.sqrt(hidden_dim)
    b1 = jnp.zeros((1, hidden_dim), jnp.float32)
    b2 = jnp.zeros((1, out_dim), jnp.float32)
    splits = [int(s) for s in np.cumsum(split_dims)[:-1]]
    w1_parts = tuple(p.astype(jnp.bfloat16) for p in jnp.split(w1, splits, axis=0))
    if out_dim == 1:
        w2_out = w2.T.astype(jnp.bfloat16)          # (1, H): lane-dense scalar head
    else:
        w2_out = w2.astype(jnp.bfloat16)            # (H, out_dim)
    return (*w1_parts, b1, w2_out, b2)


def _as_col_i32(a):
    return jnp.asarray(np.asarray(a, np.int32).reshape(-1, 1))


def _as_row_i32(a):
    return jnp.asarray(np.asarray(a, np.int32).reshape(1, -1))


def _as_row_f32(a):
    return jnp.asarray(np.asarray(a, np.float32).reshape(1, -1))


# --------------------------------------------------------------------------------------
# Module
# --------------------------------------------------------------------------------------

class GraphDecoderSwitched:
    def __init__(self, key, Z_dim=64, fragment_library_dim=64, EGNN_layer_dim=64,
                 output_MLP_hidden_dim=64):
        self.Z_dim = Z_dim
        self.fragment_library_dim = fragment_library_dim
        self.EGNN_layer_dim = EGNN_layer_dim
        Z, E, F, H = Z_dim, EGNN_layer_dim, fragment_library_dim, output_MLP_hidden_dim
        ks = jax.random.split(key, 5)
        self.stop_params = _init_head(ks[0], (Z,), 1, H)                 # (w1, b1, w2t, b2)
        self.fa_params = _init_head(ks[1], (Z, E), 1, H)                 # (w1z, w1e, b1, w2t, b2)
        self.nf_params = _init_head(ks[2], (Z, E, F), 1, H)              # (w1z, w1e, w1f, b1, w2t, b2)
        self.nfa_params = _init_head(ks[3], (Z, E, F, F), 1, H)          # (w1z, w1e, w1f, w1a, b1, w2t, b2)
        self.bond_params = _init_head(ks[4], (Z, E, F, F), 4, H)         # (w1z, w1e, w1f, w1p, b1, w2, b2)

    # -------------------------------------------------------------------------
    def decode_stop(self, graph_subgraph_focal_features_concat):
        gsfc = jnp.asarray(graph_subgraph_focal_features_concat, jnp.float32)
        b = gsfc.shape[0]
        out = pl.pallas_call(
            _stop_only_kernel,
            out_shape=jax.ShapeDtypeStruct((1, b), jnp.float32),
        )(gsfc, *self.stop_params)
        return out.reshape(b, 1)

    # -------------------------------------------------------------------------
    def forward(self,
                fragment_library_features,
                fragment_library_node_features,
                graph_subgraph_focal_features_concat,
                h_partial,
                h_focal,
                next_atom_type_library_idx,
                stop_mask,
                stop_focal_mask,
                masked_focal_batch_index_reindexed,
                focal_attachment_index_rel_partial,
                next_atom_attachment_indices,
                masked_next_atom_attachment_batch_index_reindexed,
                masked_multihot_next_attachments,
                all_stop=False):

        gsfc = jnp.asarray(graph_subgraph_focal_features_concat, jnp.float32)
        if all_stop:
            return (self.decode_stop(gsfc), None, None, None, None)

        # ---- host-side numpy bookkeeping only (masks/indices are host metadata;
        #      no device array is pulled to the host here) -------------------------------
        stop_mask = np.asarray(stop_mask, dtype=bool)
        stop_focal_mask = np.asarray(stop_focal_mask, dtype=bool)
        mfbir = np.asarray(masked_focal_batch_index_reindexed, dtype=np.int32)
        mnaabir = np.asarray(masked_next_atom_attachment_batch_index_reindexed, dtype=np.int32)
        multihot = np.asarray(masked_multihot_next_attachments, dtype=np.float32)
        naai = np.asarray(next_atom_attachment_indices, dtype=np.int32)
        fair = np.asarray(focal_attachment_index_rel_partial, dtype=np.int32)
        natli = np.asarray(next_atom_type_library_idx, dtype=np.int32)

        masked_graph_idx = np.nonzero(stop_mask)[0].astype(np.int32)     # (Nm,)
        focal_sel_idx = np.nonzero(stop_focal_mask)[0].astype(np.int32)  # (Nfm,)
        focal_atom_idx = fair[stop_mask]                                 # (Nm,)
        next_frag_idx = natli[stop_mask]                                 # (Nm,)

        n_m = int(masked_graph_idx.shape[0])
        n_fm = int(focal_sel_idx.shape[0])
        n_att = int(naai.shape[0])
        b = int(gsfc.shape[0])
        n_lib = int(fragment_library_features.shape[0])

        out_shapes = (
            jax.ShapeDtypeStruct((1, b), jnp.float32),          # stop logits (lane-dense row)
            jax.ShapeDtypeStruct((n_m, n_lib), jnp.float32),    # next atom/fragment logits
            jax.ShapeDtypeStruct((1, n_fm), jnp.float32),       # fragment attachment softmax
            jax.ShapeDtypeStruct((1, n_att), jnp.float32),      # next frag attachment softmax
            jax.ShapeDtypeStruct((n_m, 4), jnp.float32),        # bond type logits
        )

        stop_row, naf, fa_sm, nfa_sm, bond = pl.pallas_call(
            _fused_decoder_kernel,
            out_shape=out_shapes,
            compiler_params=pltpu.CompilerParams(vmem_limit_bytes=32 * 1024 * 1024),
        )(
            gsfc,
            jnp.asarray(h_focal, jnp.float32),
            jnp.asarray(h_partial, jnp.float32),
            jnp.asarray(fragment_library_features, jnp.float32),
            jnp.asarray(fragment_library_node_features, jnp.float32),
            _as_col_i32(masked_graph_idx), _as_col_i32(focal_sel_idx),
            _as_col_i32(mfbir), _as_row_i32(mfbir),
            _as_col_i32(focal_atom_idx), _as_col_i32(next_frag_idx), _as_col_i32(naai),
            _as_col_i32(mnaabir), _as_row_i32(mnaabir), _as_row_f32(multihot),
            *self.stop_params, *self.fa_params, *self.nf_params,
            *self.nfa_params, *self.bond_params,
        )

        return (stop_row.reshape(b, 1), naf, fa_sm.reshape(-1), nfa_sm.reshape(-1), bond)


# --------------------------------------------------------------------------------------
# Demo
# --------------------------------------------------------------------------------------

if __name__ == "__main__":
    key = jax.random.PRNGKey(0)
    kparam, kdata = jax.random.split(key)

    Z = F = E = H = 32
    B = 6                   # graphs
    N_LIB = 10              # fragment library size
    N_LIB_NODES = 25        # fragment library node count
    N_PARTIAL = 20
    N_FOCAL = 15

    decoder = GraphDecoderSwitched(kparam, Z_dim=Z, fragment_library_dim=F,
                                   EGNN_layer_dim=E, output_MLP_hidden_dim=H)

    dks = jax.random.split(kdata, 8)
    fragment_library_features = jax.random.normal(dks[0], (N_LIB, F), jnp.float32)
    fragment_library_node_features = jax.random.normal(dks[1], (N_LIB_NODES, F), jnp.float32)
    graph_subgraph_focal_features_concat = jax.random.normal(dks[2], (B, Z), jnp.float32)
    h_partial = jax.random.normal(dks[3], (N_PARTIAL, E), jnp.float32)
    h_focal = jax.random.normal(dks[4], (N_FOCAL, E), jnp.float32)

    # synthetic index / mask structure (host-side metadata, numpy)
    stop_mask = np.array([True, False, True, True, False, True])          # Nm = 4
    stop_focal_mask = np.array(
        [1, 1, 1, 0, 1, 1, 1, 1, 1, 1, 0, 1, 1, 1, 0], dtype=bool)        # 12 selected
    masked_focal_batch_index_reindexed = np.array(
        [0, 0, 0, 1, 1, 2, 2, 2, 2, 3, 3, 3], dtype=np.int32)             # len 12, segs in [0,4)
    focal_attachment_index_rel_partial = np.array([3, 7, 0, 11, 5, 19], dtype=np.int32)
    next_atom_type_library_idx = np.array([1, 4, 2, 9, 0, 7], dtype=np.int32)
    next_atom_attachment_indices = np.array(
        [0, 5, 3, 12, 8, 20, 17, 2, 9, 14, 24], dtype=np.int32)           # Natt = 11
    masked_next_atom_attachment_batch_index_reindexed = np.array(
        [0, 0, 0, 1, 1, 2, 2, 2, 3, 3, 3], dtype=np.int32)
    masked_multihot_next_attachments = np.array(
        [1, 0, 1, 1, 0, 0, 1, 1, 1, 1, 0], dtype=bool)                    # >=1 True per segment

    outs = decoder.forward(
        fragment_library_features,
        fragment_library_node_features,
        graph_subgraph_focal_features_concat,
        h_partial,
        h_focal,
        next_atom_type_library_idx,
        stop_mask,
        stop_focal_mask,
        masked_focal_batch_index_reindexed,
        focal_attachment_index_rel_partial,
        next_atom_attachment_indices,
        masked_next_atom_attachment_batch_index_reindexed,
        masked_multihot_next_attachments,
        all_stop=False,
    )
    for o in outs:
        if o is not None:
            jax.block_until_ready(o)

    stop_logits, next_atom_fragment_logits, fa_softmax, nfa_softmax, bond_logits = outs
    assert stop_logits.shape == (B, 1)
    assert next_atom_fragment_logits.shape == (4, N_LIB)
    assert fa_softmax.shape == (12,)
    assert nfa_softmax.shape == (11,)
    assert bond_logits.shape == (4, 4)
    for o in outs:
        assert bool(np.all(np.isfinite(np.asarray(o))))

    # segment softmaxes must sum to 1 per segment (normalization is done in f32 in-kernel)
    np.testing.assert_allclose(
        np.bincount(masked_focal_batch_index_reindexed,
                    weights=np.asarray(fa_softmax), minlength=4),
        np.ones(4), rtol=1e-5, atol=1e-6)
    np.testing.assert_allclose(
        np.bincount(masked_next_atom_attachment_batch_index_reindexed,
                    weights=np.asarray(nfa_softmax), minlength=4),
        np.ones(4), rtol=1e-5, atol=1e-6)

    # exercise the all_stop path (stop-only kernel)
    stop_only = decoder.forward(
        fragment_library_features, fragment_library_node_features,
        graph_subgraph_focal_features_concat, h_partial, h_focal,
        next_atom_type_library_idx, stop_mask, stop_focal_mask,
        masked_focal_batch_index_reindexed, focal_attachment_index_rel_partial,
        next_atom_attachment_indices, masked_next_atom_attachment_batch_index_reindexed,
        masked_multihot_next_attachments, all_stop=True)
    jax.block_until_ready(stop_only[0])
    assert stop_only[0].shape == (B, 1) and all(x is None for x in stop_only[1:])

    print("KERNEL_OK")
</pallas_src>

<mosaic_0001>
module attributes {stable_mosaic.version = 11 : i64} {
  func.func @_fused_decoder_kernel(%arg0: memref<6x32xf32, #tpu.memory_space<vmem>>, %arg1: memref<15x32xf32, #tpu.memory_space<vmem>>, %arg2: memref<20x32xf32, #tpu.memory_space<vmem>>, %arg3: memref<10x32xf32, #tpu.memory_space<vmem>>, %arg4: memref<25x32xf32, #tpu.memory_space<vmem>>, %arg5: memref<4x1xi32, #tpu.memory_space<vmem>>, %arg6: memref<12x1xi32, #tpu.memory_space<vmem>>, %arg7: memref<12x1xi32, #tpu.memory_space<vmem>>, %arg8: memref<1x12xi32, #tpu.memory_space<vmem>>, %arg9: memref<4x1xi32, #tpu.memory_space<vmem>>, %arg10: memref<4x1xi32, #tpu.memory_space<vmem>>, %arg11: memref<11x1xi32, #tpu.memory_space<vmem>>, %arg12: memref<11x1xi32, #tpu.memory_space<vmem>>, %arg13: memref<1x11xi32, #tpu.memory_space<vmem>>, %arg14: memref<1x11xf32, #tpu.memory_space<vmem>>, %arg15: memref<32x32xbf16, #tpu.memory_space<vmem>>, %arg16: memref<1x32xf32, #tpu.memory_space<vmem>>, %arg17: memref<1x32xbf16, #tpu.memory_space<vmem>>, %arg18: memref<1x1xf32, #tpu.memory_space<vmem>>, %arg19: memref<32x32xbf16, #tpu.memory_space<vmem>>, %arg20: memref<32x32xbf16, #tpu.memory_space<vmem>>, %arg21: memref<1x32xf32, #tpu.memory_space<vmem>>, %arg22: memref<1x32xbf16, #tpu.memory_space<vmem>>, %arg23: memref<1x1xf32, #tpu.memory_space<vmem>>, %arg24: memref<32x32xbf16, #tpu.memory_space<vmem>>, %arg25: memref<32x32xbf16, #tpu.memory_space<vmem>>, %arg26: memref<32x32xbf16, #tpu.memory_space<vmem>>, %arg27: memref<1x32xf32, #tpu.memory_space<vmem>>, %arg28: memref<1x32xbf16, #tpu.memory_space<vmem>>, %arg29: memref<1x1xf32, #tpu.memory_space<vmem>>, %arg30: memref<32x32xbf16, #tpu.memory_space<vmem>>, %arg31: memref<32x32xbf16, #tpu.memory_space<vmem>>, %arg32: memref<32x32xbf16, #tpu.memory_space<vmem>>, %arg33: memref<32x32xbf16, #tpu.memory_space<vmem>>, %arg34: memref<1x32xf32, #tpu.memory_space<vmem>>, %arg35: memref<1x32xbf16, #tpu.memory_space<vmem>>, %arg36: memref<1x1xf32, #tpu.memory_space<vmem>>, %arg37: memref<32x32xbf16, #tpu.memory_space<vmem>>, %arg38: memref<32x32xbf16, #tpu.memory_space<vmem>>, %arg39: memref<32x32xbf16, #tpu.memory_space<vmem>>, %arg40: memref<32x32xbf16, #tpu.memory_space<vmem>>, %arg41: memref<1x32xf32, #tpu.memory_space<vmem>>, %arg42: memref<32x4xbf16, #tpu.memory_space<vmem>>, %arg43: memref<1x4xf32, #tpu.memory_space<vmem>>, %arg44: memref<1x6xf32, #tpu.memory_space<vmem>>, %arg45: memref<4x10xf32, #tpu.memory_space<vmem>>, %arg46: memref<1x12xf32, #tpu.memory_space<vmem>>, %arg47: memref<1x11xf32, #tpu.memory_space<vmem>>, %arg48: memref<4x4xf32, #tpu.memory_space<vmem>>) attributes {dimension_semantics = [], scalar_prefetch = 0 : i64, scratch_operands = 0 : i64, tpu.core_type = #tpu.core_type<tc>} {
    %c0 = arith.constant 0 : index
    %c0_0 = arith.constant 0 : index
    %0 = vector.load %arg0[%c0, %c0_0] : memref<6x32xf32, #tpu.memory_space<vmem>>, vector<6x32xf32>
    %1 = arith.truncf %0 : vector<6x32xf32> to vector<6x32xbf16>
    %c0_1 = arith.constant 0 : index
    %c0_2 = arith.constant 0 : index
    %2 = vector.load %arg15[%c0_1, %c0_2] : memref<32x32xbf16, #tpu.memory_space<vmem>>, vector<32x32xbf16>
    %cst = arith.constant dense<0.000000e+00> : vector<6x32xf32>
    %3 = tpu.matmul %1, %2, %cst {dimension_numbers = #tpu.dot_dimension_numbers<[1], [0], [0], [1], [0, 0, 1, 1], [], []>} : vector<6x32xbf16>, vector<32x32xbf16>, vector<6x32xf32> -> vector<6x32xf32>
    %c0_3 = arith.constant 0 : index
    %c0_4 = arith.constant 0 : index
    %4 = vector.load %arg16[%c0_3, %c0_4] : memref<1x32xf32, #tpu.memory_space<vmem>>, vector<1x32xf32>
    %5 = vector.broadcast %4 : vector<1x32xf32> to vector<6x32xf32>
    %6 = arith.addf %3, %5 : vector<6x32xf32>
    %cst_5 = arith.constant 5.000000e-01 : f32
    %7 = vector.broadcast %cst_5 : f32 to vector<6x32xf32>
    %8 = arith.mulf %7, %6 : vector<6x32xf32>
    %9 = math.tanh %8 : vector<6x32xf32>
    %cst_6 = arith.constant 1.000000e+00 : f32
    %10 = vector.broadcast %cst_6 : f32 to vector<6x32xf32>
    %11 = arith.addf %9, %10 : vector<6x32xf32>
    %cst_7 = arith.constant 5.000000e-01 : f32
    %12 = vector.broadcast %cst_7 : f32 to vector<6x32xf32>
    %13 = arith.mulf %12, %11 : vector<6x32xf32>
    %14 = arith.mulf %6, %13 : vector<6x32xf32>
    %c0_8 = arith.constant 0 : index
    %c0_9 = arith.constant 0 : index
    %15 = vector.load %arg17[%c0_8, %c0_9] : memref<1x32xbf16, #tpu.memory_space<vmem>>, vector<1x32xbf16>
    %c0_10 = arith.constant 0 : index
    %c0_11 = arith.constant 0 : index
    %16 = vector.load %arg18[%c0_10, %c0_11] : memref<1x1xf32, #tpu.memory_space<vmem>>, vector<1x1xf32>
    %17 = tpu.transpose %14, [1, 0] : vector<6x32xf32> -> vector<32x6xf32>
    %18 = arith.truncf %17 : vector<32x6xf32> to vector<32x6xbf16>
    %cst_12 = arith.constant dense<0.000000e+00> : vector<1x6xf32>
    %19 = tpu.matmul %15, %18, %cst_12 {dimension_numbers = #tpu.dot_dimension_numbers<[1], [0], [0], [1], [0, 0, 1, 1], [], []>} : vector<1x32xbf16>, vector<32x6xbf16>, vector<1x6xf32> -> vector<1x6xf32>
    %20 = vector.broadcast %16 : vector<1x1xf32> to vector<1x6xf32>
    %21 = arith.addf %19, %20 : vector<1x6xf32>
    %c0_13 = arith.constant 0 : index
    %c0_14 = arith.constant 0 : index
    %22 = vector.load %arg44[%c0_13, %c0_14] : memref<1x6xf32, #tpu.memory_space<vmem>>, vector<1x6xf32>
    tpu.vector_store %arg44[%c0_13, %c0_14], %21 {strides = array<i32>} : memref<1x6xf32, #tpu.memory_space<vmem>>, vector<1x6xf32>,
    %c0_15 = arith.constant 0 : index
    %c0_16 = arith.constant 0 : index
    %23 = vector.load %arg5[%c0_15, %c0_16] : memref<4x1xi32, #tpu.memory_space<vmem>>, vector<4x1xi32>
    %24 = tpu.iota {dimensions = array<i32: 1>} : vector<4x6xi32>
    %25 = vector.broadcast %23 : vector<4x1xi32> to vector<4x6xi32>
    %26 = arith.cmpi eq, %24, %25 : vector<4x6xi32>
    %27 = arith.extui %26 : vector<4x6xi1> to vector<4x6xi32>
    %28 = arith.sitofp %27 : vector<4x6xi32> to vector<4x6xf32>
    %cst_17 = arith.constant dense<0.000000e+00> : vector<4x32xf32>
    %29 = tpu.matmul %28, %0, %cst_17 {dimension_numbers = #tpu.dot_dimension_numbers<[1], [0], [0], [1], [0, 0, 1, 1], [], []>} : vector<4x6xf32>, vector<6x32xf32>, vector<4x32xf32> -> vector<4x32xf32>
    %c0_18 = arith.constant 0 : index
    %c0_19 = arith.constant 0 : index
    %30 = vector.load %arg6[%c0_18, %c0_19] : memref<12x1xi32, #tpu.memory_space<vmem>>, vector<12x1xi32>
    %c0_20 = arith.constant 0 : index
    %c0_21 = arith.constant 0 : index
    %31 = vector.load %arg1[%c0_20, %c0_21] : memref<15x32xf32, #tpu.memory_space<vmem>>, vector<15x32xf32>
    %32 = tpu.iota {dimensions = array<i32: 1>} : vector<12x15xi32>
    %33 = vector.broadcast %30 : vector<12x1xi32> to vector<12x15xi32>
    %34 = arith.cmpi eq, %32, %33 : vector<12x15xi32>
    %35 = arith.extui %34 : vector<12x15xi1> to vector<12x15xi32>
    %36 = arith.sitofp %35 : vector<12x15xi32> to vector<12x15xf32>
    %cst_22 = arith.constant dense<0.000000e+00> : vector<12x32xf32>
    %37 = tpu.matmul %36, %31, %cst_22 {dimension_numbers = #tpu.dot_dimension_numbers<[1], [0], [0], [1], [0, 0, 1, 1], [], []>} : vector<12x15xf32>, vector<15x32xf32>, vector<12x32xf32> -> vector<12x32xf32>
    %c0_23 = arith.constant 0 : index
    %c0_24 = arith.constant 0 : index
    %38 = vector.load %arg9[%c0_23, %c0_24] : memref<4x1xi32, #tpu.memory_space<vmem>>, vector<4x1xi32>
    %c0_25 = arith.constant 0 : index
    %c0_26 = arith.constant 0 : index
    %39 = vector.load %arg2[%c0_25, %c0_26] : memref<20x32xf32, #tpu.memory_space<vmem>>, vector<20x32xf32>
    %40 = tpu.iota {dimensions = array<i32: 1>} : vector<4x20xi32>
    %41 = vector.broadcast %38 : vector<4x1xi32> to vector<4x20xi32>
    %42 = arith.cmpi eq, %40, %41 : vector<4x20xi32>
    %43 = arith.extui %42 : vector<4x20xi1> to vector<4x20xi32>
    %44 = arith.sitofp %43 : vector<4x20xi32> to vector<4x20xf32>
    %cst_27 = arith.constant dense<0.000000e+00> : vector<4x32xf32>
    %45 = tpu.matmul %44, %39, %cst_27 {dimension_numbers = #tpu.dot_dimension_numbers<[1], [0], [0], [1], [0, 0, 1, 1], [], []>} : vector<4x20xf32>, vector<20x32xf32>, vector<4x32xf32> -> vector<4x32xf32>
    %c0_28 = arith.constant 0 : index
    %c0_29 = arith.constant 0 : index
    %46 = vector.load %arg3[%c0_28, %c0_29] : memref<10x32xf32, #tpu.memory_space<vmem>>, vector<10x32xf32>
    %c0_30 = arith.constant 0 : index
    %c0_31 = arith.constant 0 : index
    %47 = vector.load %arg10[%c0_30, %c0_31] : memref<4x1xi32, #tpu.memory_space<vmem>>, vector<4x1xi32>
    %48 = tpu.iota {dimensions = array<i32: 1>} : vector<4x10xi32>
    %49 = vector.broadcast %47 : vector<4x1xi32> to vector<4x10xi32>
    %50 = arith.cmpi eq, %48, %49 : vector<4x10xi32>
    %51 = arith.extui %50 : vector<4x10xi1> to vector<4x10xi32>
    %52 = arith.sitofp %51 : vector<4x10xi32> to vector<4x10xf32>
    %cst_32 = arith.constant dense<0.000000e+00> : vector<4x32xf32>
    %53 = tpu.matmul %52, %46, %cst_32 {dimension_numbers = #tpu.dot_dimension_numbers<[1], [0], [0], [1], [0, 0, 1, 1], [], []>} : vector<4x10xf32>, vector<10x32xf32>, vector<4x32xf32> -> vector<4x32xf32>
    %c0_33 = arith.constant 0 : index
    %c0_34 = arith.constant 0 : index
    %54 = vector.load %arg11[%c0_33, %c0_34] : memref<11x1xi32, #tpu.memory_space<vmem>>, vector<11x1xi32>
    %c0_35 = arith.constant 0 : index
    %c0_36 = arith.constant 0 : index
    %55 = vector.load %arg4[%c0_35, %c0_36] : memref<25x32xf32, #tpu.memory_space<vmem>>, vector<25x32xf32>
    %56 = tpu.iota {dimensions = array<i32: 1>} : vector<11x25xi32>
    %57 = vector.broadcast %54 : vector<11x1xi32> to vector<11x25xi32>
    %58 = arith.cmpi eq, %56, %57 : vector<11x25xi32>
    %59 = arith.extui %58 : vector<11x25xi1> to vector<11x25xi32>
    %60 = arith.sitofp %59 : vector<11x25xi32> to vector<11x25xf32>
    %cst_37 = arith.constant dense<0.000000e+00> : vector<11x32xf32>
    %61 = tpu.matmul %60, %55, %cst_37 {dimension_numbers = #tpu.dot_dimension_numbers<[1], [0], [0], [1], [0, 0, 1, 1], [], []>} : vector<11x25xf32>, vector<25x32xf32>, vector<11x32xf32> -> vector<11x32xf32>
    %62 = arith.truncf %29 : vector<4x32xf32> to vector<4x32xbf16>
    %c0_38 = arith.constant 0 : index
    %c0_39 = arith.constant 0 : index
    %63 = vector.load %arg19[%c0_38, %c0_39] : memref<32x32xbf16, #tpu.memory_space<vmem>>, vector<32x32xbf16>
    %cst_40 = arith.constant dense<0.000000e+00> : vector<4x32xf32>
    %64 = tpu.matmul %62, %63, %cst_40 {dimension_numbers = #tpu.dot_dimension_numbers<[1], [0], [0], [1], [0, 0, 1, 1], [], []>} : vector<4x32xbf16>, vector<32x32xbf16>, vector<4x32xf32> -> vector<4x32xf32>
    %c0_41 = arith.constant 0 : index
    %c0_42 = arith.constant 0 : index
    %65 = vector.load %arg7[%c0_41, %c0_42] : memref<12x1xi32, #tpu.memory_space<vmem>>, vector<12x1xi32>
    %66 = tpu.iota {dimensions = array<i32: 1>} : vector<12x4xi32>
    %67 = vector.broadcast %65 : vector<12x1xi32> to vector<12x4xi32>
    %68 = arith.cmpi eq, %66, %67 : vector<12x4xi32>
    %69 = arith.extui %68 : vector<12x4xi1> to vector<12x4xi32>
    %70 = arith.sitofp %69 : vector<12x4xi32> to vector<12x4xf32>
    %cst_43 = arith.constant dense<0.000000e+00> : vector<12x32xf32>
    %71 = tpu.matmul %70, %64, %cst_43 {dimension_numbers = #tpu.dot_dimension_numbers<[1], [0], [0], [1], [0, 0, 1, 1], [], []>} : vector<12x4xf32>, vector<4x32xf32>, vector<12x32xf32> -> vector<12x32xf32>
    %72 = arith.truncf %37 : vector<12x32xf32> to vector<12x32xbf16>
    %c0_44 = arith.constant 0 : index
    %c0_45 = arith.constant 0 : index
    %73 = vector.load %arg20[%c0_44, %c0_45] : memref<32x32xbf16, #tpu.memory_space<vmem>>, vector<32x32xbf16>
    %cst_46 = arith.constant dense<0.000000e+00> : vector<12x32xf32>
    %74 = tpu.matmul %72, %73, %cst_46 {dimension_numbers = #tpu.dot_dimension_numbers<[1], [0], [0], [1], [0, 0, 1, 1], [], []>} : vector<12x32xbf16>, vector<32x32xbf16>, vector<12x32xf32> -> vector<12x32xf32>
    %75 = arith.addf %71, %74 : vector<12x32xf32>
    %c0_47 = arith.constant 0 : index
    %c0_48 = arith.constant 0 : index
    %76 = vector.load %arg21[%c0_47, %c0_48] : memref<1x32xf32, #tpu.memory_space<vmem>>, vector<1x32xf32>
    %77 = vector.broadcast %76 : vector<1x32xf32> to vector<12x32xf32>
    %78 = arith.addf %75, %77 : vector<12x32xf32>
    %cst_49 = arith.constant 5.000000e-01 : f32
    %79 = vector.broadcast %cst_49 : f32 to vector<12x32xf32>
    %80 = arith.mulf %79, %78 : vector<12x32xf32>
    %81 = math.tanh %80 : vector<12x32xf32>
    %cst_50 = arith.constant 1.000000e+00 : f32
    %82 = vector.broadcast %cst_50 : f32 to vector<12x32xf32>
    %83 = arith.addf %81, %82 : vector<12x32xf32>
    %cst_51 = arith.constant 5.000000e-01 : f32
    %84 = vector.broadcast %cst_51 : f32 to vector<12x32xf32>
    %85 = arith.mulf %84, %83 : vector<12x32xf32>
    %86 = arith.mulf %78, %85 : vector<12x32xf32>
    %c0_52 = arith.constant 0 : index
    %c0_53 = arith.constant 0 : index
    %87 = vector.load %arg22[%c0_52, %c0_53] : memref<1x32xbf16, #tpu.memory_space<vmem>>, vector<1x32xbf16>
    %c0_54 = arith.constant 0 : index
    %c0_55 = arith.constant 0 : index
    %88 = vector.load %arg23[%c0_54, %c0_55] : memref<1x1xf32, #tpu.memory_space<vmem>>, vector<1x1xf32>
    %89 = tpu.transpose %86, [1, 0] : vector<12x32xf32> -> vector<32x12xf32>
    %90 = arith.truncf %89 : vector<32x12xf32> to vector<32x12xbf16>
    %cst_56 = arith.constant dense<0.000000e+00> : vector<1x12xf32>
    %91 = tpu.matmul %87, %90, %cst_56 {dimension_numbers = #tpu.dot_dimension_numbers<[1], [0], [0], [1], [0, 0, 1, 1], [], []>} : vector<1x32xbf16>, vector<32x12xbf16>, vector<1x12xf32> -> vector<1x12xf32>
    %92 = vector.broadcast %88 : vector<1x1xf32> to vector<1x12xf32>
    %93 = arith.addf %91, %92 : vector<1x12xf32>
    %c0_57 = arith.constant 0 : index
    %c0_58 = arith.constant 0 : index
    %94 = vector.load %arg8[%c0_57, %c0_58] : memref<1x12xi32, #tpu.memory_space<vmem>>, vector<1x12xi32>
    %95 = tpu.iota {dimensions = array<i32: 0>} : vector<4x12xi32>
    %96 = vector.broadcast %94 : vector<1x12xi32> to vector<4x12xi32>
    %97 = arith.cmpi eq, %95, %96 : vector<4x12xi32>
    %98 = arith.extui %97 : vector<4x12xi1> to vector<4x12xi32>
    %99 = arith.sitofp %98 : vector<4x12xi32> to vector<4x12xf32>
    %cst_59 = arith.constant -1.000000e+30 : f32
    %100 = vector.shape_cast %93 : vector<1x12xf32> to vector<1x12xf32>
    %101 = vector.broadcast %100 : vector<1x12xf32> to vector<4x12xf32>
    %102 = vector.broadcast %cst_59 : f32 to vector<4x12xf32>
    %103 = arith.select %97, %101, %102 : vector<4x12xi1>, vector<4x12xf32>
    %cst_60 = arith.constant dense<0xFF800000> : vector<4xf32>
    %104 = vector.multi_reduction <maximumf>, %103, %cst_60 [1] : vector<4x12xf32> to vector<4xf32>
    %105 = vector.shape_cast %104 : vector<4xf32> to vector<4x1xf32>
    %106 = vector.broadcast %105 : vector<4x1xf32> to vector<4x12xf32>
    %107 = arith.mulf %99, %106 : vector<4x12xf32>
    %cst_61 = arith.constant dense<0.000000e+00> : vector<12xf32>
    %108 = vector.multi_reduction <add>, %107, %cst_61 [0] : vector<4x12xf32> to vector<12xf32>
    %109 = vector.shape_cast %108 : vector<12xf32> to vector<1x12xf32>
    %110 = arith.subf %93, %109 : vector<1x12xf32>
    %111 = math.exp %110 : vector<1x12xf32>
    %112 = vector.broadcast %111 : vector<1x12xf32> to vector<4x12xf32>
    %113 = arith.mulf %99, %112 : vector<4x12xf32>
    %cst_62 = arith.constant dense<0.000000e+00> : vector<4xf32>
    %114 = vector.multi_reduction <add>, %113, %cst_62 [1] : vector<4x12xf32> to vector<4xf32>
    %115 = vector.shape_cast %114 : vector<4xf32> to vector<4x1xf32>
    %116 = vector.broadcast %115 : vector<4x1xf32> to vector<4x12xf32>
    %117 = arith.mulf %99, %116 : vector<4x12xf32>
    %cst_63 = arith.constant dense<0.000000e+00> : vector<12xf32>
    %118 = vector.multi_reduction <add>, %117, %cst_63 [0] : vector<4x12xf32> to vector<12xf32>
    %119 = vector.shape_cast %118 : vector<12xf32> to vector<1x12xf32>
    %120 = arith.divf %111, %119 : vector<1x12xf32>
    %c0_64 = arith.constant 0 : index
    %c0_65 = arith.constant 0 : index
    %121 = vector.load %arg46[%c0_64, %c0_65] : memref<1x12xf32, #tpu.memory_space<vmem>>, vector<1x12xf32>
    tpu.vector_store %arg46[%c0_64, %c0_65], %120 {strides = array<i32>} : memref<1x12xf32, #tpu.memory_space<vmem>>, vector<1x12xf32>,
    %122 = arith.truncf %29 : vector<4x32xf32> to vector<4x32xbf16>
    %c0_66 = arith.constant 0 : index
    %c0_67 = arith.constant 0 : index
    %123 = vector.load %arg24[%c0_66, %c0_67] : memref<32x32xbf16, #tpu.memory_space<vmem>>, vector<32x32xbf16>
    %cst_68 = arith.constant dense<0.000000e+00> : vector<4x32xf32>
    %124 = tpu.matmul %122, %123, %cst_68 {dimension_numbers = #tpu.dot_dimension_numbers<[1], [0], [0], [1], [0, 0, 1, 1], [], []>} : vector<4x32xbf16>, vector<32x32xbf16>, vector<4x32xf32> -> vector<4x32xf32>
    %125 = arith.truncf %45 : vector<4x32xf32> to vector<4x32xbf16>
    %c0_69 = arith.constant 0 : index
    %c0_70 = arith.constant 0 : index
    %126 = vector.load %arg25[%c0_69, %c0_70] : memref<32x32xbf16, #tpu.memory_space<vmem>>, vector<32x32xbf16>
    %cst_71 = arith.constant dense<0.000000e+00> : vector<4x32xf32>
    %127 = tpu.matmul %125, %126, %cst_71 {dimension_numbers = #tpu.dot_dimension_numbers<[1], [0], [0], [1], [0, 0, 1, 1], [], []>} : vector<4x32xbf16>, vector<32x32xbf16>, vector<4x32xf32> -> vector<4x32xf32>
    %128 = arith.addf %124, %127 : vector<4x32xf32>
    %129 = arith.truncf %46 : vector<10x32xf32> to vector<10x32xbf16>
    %c0_72 = arith.constant 0 : index
    %c0_73 = arith.constant 0 : index
    %130 = vector.load %arg26[%c0_72, %c0_73] : memref<32x32xbf16, #tpu.memory_space<vmem>>, vector<32x32xbf16>
    %cst_74 = arith.constant dense<0.000000e+00> : vector<10x32xf32>
    %131 = tpu.matmul %129, %130, %cst_74 {dimension_numbers = #tpu.dot_dimension_numbers<[1], [0], [0], [1], [0, 0, 1, 1], [], []>} : vector<10x32xbf16>, vector<32x32xbf16>, vector<10x32xf32> -> vector<10x32xf32>
    %c0_75 = arith.constant 0 : index
    %c0_76 = arith.constant 0 : index
    %132 = vector.load %arg27[%c0_75, %c0_76] : memref<1x32xf32, #tpu.memory_space<vmem>>, vector<1x32xf32>
    %133 = vector.broadcast %132 : vector<1x32xf32> to vector<10x32xf32>
    %134 = arith.addf %131, %133 : vector<10x32xf32>
    %c0_77 = arith.constant 0 : index
    %c0_78 = arith.constant 0 : index
    %135 = vector.load %arg28[%c0_77, %c0_78] : memref<1x32xbf16, #tpu.memory_space<vmem>>, vector<1x32xbf16>
    %c0_79 = arith.constant 0 : index
    %c0_80 = arith.constant 0 : index
    %136 = vector.load %arg29[%c0_79, %c0_80] : memref<1x1xf32, #tpu.memory_space<vmem>>, vector<1x1xf32>
    %137 = vector.extract_strided_slice %128 {offsets = [0, 0], sizes = [1, 32], strides = [1, 1]} : vector<4x32xf32> to vector<1x32xf32>
    %138 = vector.broadcast %137 : vector<1x32xf32> to vector<10x32xf32>
    %139 = arith.addf %134, %138 : vector<10x32xf32>
    %cst_81 = arith.constant 5.000000e-01 : f32
    %140 = vector.broadcast %cst_81 : f32 to vector<10x32xf32>
    %141 = arith.mulf %140, %139 : vector<10x32xf32>
    %142 = math.tanh %141 : vector<10x32xf32>
    %cst_82 = arith.constant 1.000000e+00 : f32
    %143 = vector.broadcast %cst_82 : f32 to vector<10x32xf32>
    %144 = arith.addf %142, %143 : vector<10x32xf32>
    %cst_83 = arith.constant 5.000000e-01 : f32
    %145 = vector.broadcast %cst_83 : f32 to vector<10x32xf32>
    %146 = arith.mulf %145, %144 : vector<10x32xf32>
    %147 = arith.mulf %139, %146 : vector<10x32xf32>
    %148 = tpu.transpose %147, [1, 0] : vector<10x32xf32> -> vector<32x10xf32>
    %149 = arith.truncf %148 : vector<32x10xf32> to vector<32x10xbf16>
    %cst_84 = arith.constant dense<0.000000e+00> : vector<1x10xf32>
    %150 = tpu.matmul %135, %149, %cst_84 {dimension_numbers = #tpu.dot_dimension_numbers<[1], [0], [0], [1], [0, 0, 1, 1], [], []>} : vector<1x32xbf16>, vector<32x10xbf16>, vector<1x10xf32> -> vector<1x10xf32>
    %151 = vector.broadcast %136 : vector<1x1xf32> to vector<1x10xf32>
    %152 = arith.addf %150, %151 : vector<1x10xf32>
    %c0_85 = arith.constant 0 : index
    %c0_86 = arith.constant 0 : index
    %153 = vector.load %arg45[%c0_85, %c0_86] : memref<4x10xf32, #tpu.memory_space<vmem>>, vector<1x10xf32>
    tpu.vector_store %arg45[%c0_85, %c0_86], %152 {strides = array<i32>} : memref<4x10xf32, #tpu.memory_space<vmem>>, vector<1x10xf32>,
    %154 = vector.extract_strided_slice %128 {offsets = [1, 0], sizes = [1, 32], strides = [1, 1]} : vector<4x32xf32> to vector<1x32xf32>
    %155 = vector.broadcast %154 : vector<1x32xf32> to vector<10x32xf32>
    %156 = arith.addf %134, %155 : vector<10x32xf32>
    %cst_87 = arith.constant 5.000000e-01 : f32
    %157 = vector.broadcast %cst_87 : f32 to vector<10x32xf32>
    %158 = arith.mulf %157, %156 : vector<10x32xf32>
    %159 = math.tanh %158 : vector<10x32xf32>
    %cst_88 = arith.constant 1.000000e+00 : f32
    %160 = vector.broadcast %cst_88 : f32 to vector<10x32xf32>
    %161 = arith.addf %159, %160 : vector<10x32xf32>
    %cst_89 = arith.constant 5.000000e-01 : f32
    %162 = vector.broadcast %cst_89 : f32 to vector<10x32xf32>
    %163 = arith.mulf %162, %161 : vector<10x32xf32>
    %164 = arith.mulf %156, %163 : vector<10x32xf32>
    %165 = tpu.transpose %164, [1, 0] : vector<10x32xf32> -> vector<32x10xf32>
    %166 = arith.truncf %165 : vector<32x10xf32> to vector<32x10xbf16>
    %cst_90 = arith.constant dense<0.000000e+00> : vector<1x10xf32>
    %167 = tpu.matmul %135, %166, %cst_90 {dimension_numbers = #tpu.dot_dimension_numbers<[1], [0], [0], [1], [0, 0, 1, 1], [], []>} : vector<1x32xbf16>, vector<32x10xbf16>, vector<1x10xf32> -> vector<1x10xf32>
    %168 = vector.broadcast %136 : vector<1x1xf32> to vector<1x10xf32>
    %169 = arith.addf %167, %168 : vector<1x10xf32>
    %c1 = arith.constant 1 : index
    %c0_91 = arith.constant 0 : index
    %170 = vector.load %arg45[%c1, %c0_91] : memref<4x10xf32, #tpu.memory_space<vmem>>, vector<1x10xf32>
    tpu.vector_store %arg45[%c1, %c0_91], %169 {strides = array<i32>} : memref<4x10xf32, #tpu.memory_space<vmem>>, vector<1x10xf32>,
    %171 = vector.extract_strided_slice %128 {offsets = [2, 0], sizes = [1, 32], strides = [1, 1]} : vector<4x32xf32> to vector<1x32xf32>
    %172 = vector.broadcast %171 : vector<1x32xf32> to vector<10x32xf32>
    %173 = arith.addf %134, %172 : vector<10x32xf32>
    %cst_92 = arith.constant 5.000000e-01 : f32
    %174 = vector.broadcast %cst_92 : f32 to vector<10x32xf32>
    %175 = arith.mulf %174, %173 : vector<10x32xf32>
    %176 = math.tanh %175 : vector<10x32xf32>
    %cst_93 = arith.constant 1.000000e+00 : f32
    %177 = vector.broadcast %cst_93 : f32 to vector<10x32xf32>
    %178 = arith.addf %176, %177 : vector<10x32xf32>
    %cst_94 = arith.constant 5.000000e-01 : f32
    %179 = vector.broadcast %cst_94 : f32 to vector<10x32xf32>
    %180 = arith.mulf %179, %178 : vector<10x32xf32>
    %181 = arith.mulf %173, %180 : vector<10x32xf32>
    %182 = tpu.transpose %181, [1, 0] : vector<10x32xf32> -> vector<32x10xf32>
    %183 = arith.truncf %182 : vector<32x10xf32> to vector<32x10xbf16>
    %cst_95 = arith.constant dense<0.000000e+00> : vector<1x10xf32>
    %184 = tpu.matmul %135, %183, %cst_95 {dimension_numbers = #tpu.dot_dimension_numbers<[1], [0], [0], [1], [0, 0, 1, 1], [], []>} : vector<1x32xbf16>, vector<32x10xbf16>, vector<1x10xf32> -> vector<1x10xf32>
    %185 = vector.broadcast %136 : vector<1x1xf32> to vector<1x10xf32>
    %186 = arith.addf %184, %185 : vector<1x10xf32>
    %c2 = arith.constant 2 : index
    %c0_96 = arith.constant 0 : index
    %187 = vector.load %arg45[%c2, %c0_96] : memref<4x10xf32, #tpu.memory_space<vmem>>, vector<1x10xf32>
    tpu.vector_store %arg45[%c2, %c0_96], %186 {strides = array<i32>} : memref<4x10xf32, #tpu.memory_space<vmem>>, vector<1x10xf32>,
    %188 = vector.extract_strided_slice %128 {offsets = [3, 0], sizes = [1, 32], strides = [1, 1]} : vector<4x32xf32> to vector<1x32xf32>
    %189 = vector.broadcast %188 : vector<1x32xf32> to vector<10x32xf32>
    %190 = arith.addf %134, %189 : vector<10x32xf32>
    %cst_97 = arith.constant 5.000000e-01 : f32
    %191 = vector.broadcast %cst_97 : f32 to vector<10x32xf32>
    %192 = arith.mulf %191, %190 : vector<10x32xf32>
    %193 = math.tanh %192 : vector<10x32xf32>
    %cst_98 = arith.constant 1.000000e+00 : f32
    %194 = vector.broadcast %cst_98 : f32 to vector<10x32xf32>
    %195 = arith.addf %193, %194 : vector<10x32xf32>
    %cst_99 = arith.constant 5.000000e-01 : f32
    %196 = vector.broadcast %cst_99 : f32 to vector<10x32xf32>
    %197 = arith.mulf %196, %195 : vector<10x32xf32>
    %198 = arith.mulf %190, %197 : vector<10x32xf32>
    %199 = tpu.transpose %198, [1, 0] : vector<10x32xf32> -> vector<32x10xf32>
    %200 = arith.truncf %199 : vector<32x10xf32> to vector<32x10xbf16>
    %cst_100 = arith.constant dense<0.000000e+00> : vector<1x10xf32>
    %201 = tpu.matmul %135, %200, %cst_100 {dimension_numbers = #tpu.dot_dimension_numbers<[1], [0], [0], [1], [0, 0, 1, 1], [], []>} : vector<1x32xbf16>, vector<32x10xbf16>, vector<1x10xf32> -> vector<1x10xf32>
    %202 = vector.broadcast %136 : vector<1x1xf32> to vector<1x10xf32>
    %203 = arith.addf %201, %202 : vector<1x10xf32>
    %c3 = arith.constant 3 : index
    %c0_101 = arith.constant 0 : index
    %204 = vector.load %arg45[%c3, %c0_101] : memref<4x10xf32, #tpu.memory_space<vmem>>, vector<1x10xf32>
    tpu.vector_store %arg45[%c3, %c0_101], %203 {strides = array<i32>} : memref<4x10xf32, #tpu.memory_space<vmem>>, vector<1x10xf32>,
    %205 = arith.truncf %29 : vector<4x32xf32> to vector<4x32xbf16>
    %c0_102 = arith.constant 0 : index
    %c0_103 = arith.constant 0 : index
    %206 = vector.load %arg30[%c0_102, %c0_103] : memref<32x32xbf16, #tpu.memory_space<vmem>>, vector<32x32xbf16>
    %cst_104 = arith.constant dense<0.000000e+00> : vector<4x32xf32>
    %207 = tpu.matmul %205, %206, %cst_104 {dimension_numbers = #tpu.dot_dimension_numbers<[1], [0], [0], [1], [0, 0, 1, 1], [], []>} : vector<4x32xbf16>, vector<32x32xbf16>, vector<4x32xf32> -> vector<4x32xf32>
    %208 = arith.truncf %45 : vector<4x32xf32> to vector<4x32xbf16>
    %c0_105 = arith.constant 0 : index
    %c0_106 = arith.constant 0 : index
    %209 = vector.load %arg31[%c0_105, %c0_106] : memref<32x32xbf16, #tpu.memory_space<vmem>>, vector<32x32xbf16>
    %cst_107 = arith.constant dense<0.000000e+00> : vector<4x32xf32>
    %210 = tpu.matmul %208, %209, %cst_107 {dimension_numbers = #tpu.dot_dimension_numbers<[1], [0], [0], [1], [0, 0, 1, 1], [], []>} : vector<4x32xbf16>, vector<32x32xbf16>, vector<4x32xf32> -> vector<4x32xf32>
    %211 = arith.addf %207, %210 : vector<4x32xf32>
    %212 = arith.truncf %53 : vector<4x32xf32> to vector<4x32xbf16>
    %c0_108 = arith.constant 0 : index
    %c0_109 = arith.constant 0 : index
    %213 = vector.load %arg32[%c0_108, %c0_109] : memref<32x32xbf16, #tpu.memory_space<vmem>>, vector<32x32xbf16>
    %cst_110 = arith.constant dense<0.000000e+00> : vector<4x32xf32>
    %214 = tpu.matmul %212, %213, %cst_110 {dimension_numbers = #tpu.dot_dimension_numbers<[1], [0], [0], [1], [0, 0, 1, 1], [], []>} : vector<4x32xbf16>, vector<32x32xbf16>, vector<4x32xf32> -> vector<4x32xf32>
    %215 = arith.addf %211, %214 : vector<4x32xf32>
    %c0_111 = arith.constant 0 : index
    %c0_112 = arith.constant 0 : index
    %216 = vector.load %arg12[%c0_111, %c0_112] : memref<11x1xi32, #tpu.memory_space<vmem>>, vector<11x1xi32>
    %217 = tpu.iota {dimensions = array<i32: 1>} : vector<11x4xi32>
    %218 = vector.broadcast %216 : vector<11x1xi32> to vector<11x4xi32>
    %219 = arith.cmpi eq, %217, %218 : vector<11x4xi32>
    %220 = arith.extui %219 : vector<11x4xi1> to vector<11x4xi32>
    %221 = arith.sitofp %220 : vector<11x4xi32> to vector<11x4xf32>
    %cst_113 = arith.constant dense<0.000000e+00> : vector<11x32xf32>
    %222 = tpu.matmul %221, %215, %cst_113 {dimension_numbers = #tpu.dot_dimension_numbers<[1], [0], [0], [1], [0, 0, 1, 1], [], []>} : vector<11x4xf32>, vector<4x32xf32>, vector<11x32xf32> -> vector<11x32xf32>
    %223 = arith.truncf %61 : vector<11x32xf32> to vector<11x32xbf16>
    %c0_114 = arith.constant 0 : index
    %c0_115 = arith.constant 0 : index
    %224 = vector.load %arg33[%c0_114, %c0_115] : memref<32x32xbf16, #tpu.memory_space<vmem>>, vector<32x32xbf16>
    %cst_116 = arith.constant dense<0.000000e+00> : vector<11x32xf32>
    %225 = tpu.matmul %223, %224, %cst_116 {dimension_numbers = #tpu.dot_dimension_numbers<[1], [0], [0], [1], [0, 0, 1, 1], [], []>} : vector<11x32xbf16>, vector<32x32xbf16>, vector<11x32xf32> -> vector<11x32xf32>
    %226 = arith.addf %222, %225 : vector<11x32xf32>
    %c0_117 = arith.constant 0 : index
    %c0_118 = arith.constant 0 : index
    %227 = vector.load %arg34[%c0_117, %c0_118] : memref<1x32xf32, #tpu.memory_space<vmem>>, vector<1x32xf32>
    %228 = vector.broadcast %227 : vector<1x32xf32> to vector<11x32xf32>
    %229 = arith.addf %226, %228 : vector<11x32xf32>
    %cst_119 = arith.constant 5.000000e-01 : f32
    %230 = vector.broadcast %cst_119 : f32 to vector<11x32xf32>
    %231 = arith.mulf %230, %229 : vector<11x32xf32>
    %232 = math.tanh %231 : vector<11x32xf32>
    %cst_120 = arith.constant 1.000000e+00 : f32
    %233 = vector.broadcast %cst_120 : f32 to vector<11x32xf32>
    %234 = arith.addf %232, %233 : vector<11x32xf32>
    %cst_121 = arith.constant 5.000000e-01 : f32
    %235 = vector.broadcast %cst_121 : f32 to vector<11x32xf32>
    %236 = arith.mulf %235, %234 : vector<11x32xf32>
    %237 = arith.mulf %229, %236 : vector<11x32xf32>
    %c0_122 = arith.constant 0 : index
    %c0_123 = arith.constant 0 : index
    %238 = vector.load %arg35[%c0_122, %c0_123] : memref<1x32xbf16, #tpu.memory_space<vmem>>, vector<1x32xbf16>
    %c0_124 = arith.constant 0 : index
    %c0_125 = arith.constant 0 : index
    %239 = vector.load %arg36[%c0_124, %c0_125] : memref<1x1xf32, #tpu.memory_space<vmem>>, vector<1x1xf32>
    %240 = tpu.transpose %237, [1, 0] : vector<11x32xf32> -> vector<32x11xf32>
    %241 = arith.truncf %240 : vector<32x11xf32> to vector<32x11xbf16>
    %cst_126 = arith.constant dense<0.000000e+00> : vector<1x11xf32>
    %242 = tpu.matmul %238, %241, %cst_126 {dimension_numbers = #tpu.dot_dimension_numbers<[1], [0], [0], [1], [0, 0, 1, 1], [], []>} : vector<1x32xbf16>, vector<32x11xbf16>, vector<1x11xf32> -> vector<1x11xf32>
    %243 = vector.broadcast %239 : vector<1x1xf32> to vector<1x11xf32>
    %244 = arith.addf %242, %243 : vector<1x11xf32>
    %c0_127 = arith.constant 0 : index
    %c0_128 = arith.constant 0 : index
    %245 = vector.load %arg13[%c0_127, %c0_128] : memref<1x11xi32, #tpu.memory_space<vmem>>, vector<1x11xi32>
    %246 = tpu.iota {dimensions = array<i32: 0>} : vector<4x11xi32>
    %247 = vector.broadcast %245 : vector<1x11xi32> to vector<4x11xi32>
    %248 = arith.cmpi eq, %246, %247 : vector<4x11xi32>
    %249 = arith.extui %248 : vector<4x11xi1> to vector<4x11xi32>
    %250 = arith.sitofp %249 : vector<4x11xi32> to vector<4x11xf32>
    %cst_129 = arith.constant -1.000000e+30 : f32
    %251 = vector.shape_cast %244 : vector<1x11xf32> to vector<1x11xf32>
    %252 = vector.broadcast %251 : vector<1x11xf32> to vector<4x11xf32>
    %253 = vector.broadcast %cst_129 : f32 to vector<4x11xf32>
    %254 = arith.select %248, %252, %253 : vector<4x11xi1>, vector<4x11xf32>
    %cst_130 = arith.constant dense<0xFF800000> : vector<4xf32>
    %255 = vector.multi_reduction <maximumf>, %254, %cst_130 [1] : vector<4x11xf32> to vector<4xf32>
    %256 = vector.shape_cast %255 : vector<4xf32> to vector<4x1xf32>
    %257 = vector.broadcast %256 : vector<4x1xf32> to vector<4x11xf32>
    %258 = arith.mulf %250, %257 : vector<4x11xf32>
    %cst_131 = arith.constant dense<0.000000e+00> : vector<11xf32>
    %259 = vector.multi_reduction <add>, %258, %cst_131 [0] : vector<4x11xf32> to vector<11xf32>
    %260 = vector.shape_cast %259 : vector<11xf32> to vector<1x11xf32>
    %261 = arith.subf %244, %260 : vector<1x11xf32>
    %262 = math.exp %261 : vector<1x11xf32>
    %263 = vector.broadcast %262 : vector<1x11xf32> to vector<4x11xf32>
    %264 = arith.mulf %250, %263 : vector<4x11xf32>
    %cst_132 = arith.constant dense<0.000000e+00> : vector<4xf32>
    %265 = vector.multi_reduction <add>, %264, %cst_132 [1] : vector<4x11xf32> to vector<4xf32>
    %266 = vector.shape_cast %265 : vector<4xf32> to vector<4x1xf32>
    %267 = vector.broadcast %266 : vector<4x1xf32> to vector<4x11xf32>
    %268 = arith.mulf %250, %267 : vector<4x11xf32>
    %cst_133 = arith.constant dense<0.000000e+00> : vector<11xf32>
    %269 = vector.multi_reduction <add>, %268, %cst_133 [0] : vector<4x11xf32> to vector<11xf32>
    %270 = vector.shape_cast %269 : vector<11xf32> to vector<1x11xf32>
    %271 = arith.divf %262, %270 : vector<1x11xf32>
    %c0_134 = arith.constant 0 : index
    %c0_135 = arith.constant 0 : index
    %272 = vector.load %arg47[%c0_134, %c0_135] : memref<1x11xf32, #tpu.memory_space<vmem>>, vector<1x11xf32>
    tpu.vector_store %arg47[%c0_134, %c0_135], %271 {strides = array<i32>} : memref<1x11xf32, #tpu.memory_space<vmem>>, vector<1x11xf32>,
    %273 = arith.extui %248 : vector<4x11xi1> to vector<4x11xi32>
    %274 = arith.sitofp %273 : vector<4x11xi32> to vector<4x11xf32>
    %c0_136 = arith.constant 0 : index
    %c0_137 = arith.constant 0 : index
    %275 = vector.load %arg14[%c0_136, %c0_137] : memref<1x11xf32, #tpu.memory_space<vmem>>, vector<1x11xf32>
    %276 = vector.broadcast %275 : vector<1x11xf32> to vector<4x11xf32>
    %277 = arith.mulf %274, %276 : vector<4x11xf32>
    %cst_138 = arith.constant dense<0.000000e+00> : vector<4xf32>
    %278 = vector.multi_reduction <add>, %277, %cst_138 [1] : vector<4x11xf32> to vector<4xf32>
    %279 = vector.shape_cast %278 : vector<4xf32> to vector<4x1xf32>
    %cst_139 = arith.constant dense<0.000000e+00> : vector<4x32xf32>
    %280 = tpu.matmul %277, %61, %cst_139 {dimension_numbers = #tpu.dot_dimension_numbers<[1], [0], [0], [1], [0, 0, 1, 1], [], []>} : vector<4x11xf32>, vector<11x32xf32>, vector<4x32xf32> -> vector<4x32xf32>
    %cst_140 = arith.constant 1.000000e+00 : f32
    %281 = vector.broadcast %cst_140 : f32 to vector<4x1xf32>
    %282 = arith.maximumf %279, %281 : vector<4x1xf32>
    %283 = vector.broadcast %282 : vector<4x1xf32> to vector<4x32xf32>
    %284 = arith.divf %280, %283 : vector<4x32xf32>
    %285 = arith.truncf %29 : vector<4x32xf32> to vector<4x32xbf16>
    %c0_141 = arith.constant 0 : index
    %c0_142 = arith.constant 0 : index
    %286 = vector.load %arg37[%c0_141, %c0_142] : memref<32x32xbf16, #tpu.memory_space<vmem>>, vector<32x32xbf16>
    %cst_143 = arith.constant dense<0.000000e+00> : vector<4x32xf32>
    %287 = tpu.matmul %285, %286, %cst_143 {dimension_numbers = #tpu.dot_dimension_numbers<[1], [0], [0], [1], [0, 0, 1, 1], [], []>} : vector<4x32xbf16>, vector<32x32xbf16>, vector<4x32xf32> -> vector<4x32xf32>
    %288 = arith.truncf %45 : vector<4x32xf32> to vector<4x32xbf16>
    %c0_144 = arith.constant 0 : index
    %c0_145 = arith.constant 0 : index
    %289 = vector.load %arg38[%c0_144, %c0_145] : memref<32x32xbf16, #tpu.memory_space<vmem>>, vector<32x32xbf16>
    %cst_146 = arith.constant dense<0.000000e+00> : vector<4x32xf32>
    %290 = tpu.matmul %288, %289, %cst_146 {dimension_numbers = #tpu.dot_dimension_numbers<[1], [0], [0], [1], [0, 0, 1, 1], [], []>} : vector<4x32xbf16>, vector<32x32xbf16>, vector<4x32xf32> -> vector<4x32xf32>
    %291 = arith.addf %287, %290 : vector<4x32xf32>
    %292 = arith.truncf %53 : vector<4x32xf32> to vector<4x32xbf16>
    %c0_147 = arith.constant 0 : index
    %c0_148 = arith.constant 0 : index
    %293 = vector.load %arg39[%c0_147, %c0_148] : memref<32x32xbf16, #tpu.memory_space<vmem>>, vector<32x32xbf16>
    %cst_149 = arith.constant dense<0.000000e+00> : vector<4x32xf32>
    %294 = tpu.matmul %292, %293, %cst_149 {dimension_numbers = #tpu.dot_dimension_numbers<[1], [0], [0], [1], [0, 0, 1, 1], [], []>} : vector<4x32xbf16>, vector<32x32xbf16>, vector<4x32xf32> -> vector<4x32xf32>
    %295 = arith.addf %291, %294 : vector<4x32xf32>
    %296 = arith.truncf %284 : vector<4x32xf32> to vector<4x32xbf16>
    %c0_150 = arith.constant 0 : index
    %c0_151 = arith.constant 0 : index
    %297 = vector.load %arg40[%c0_150, %c0_151] : memref<32x32xbf16, #tpu.memory_space<vmem>>, vector<32x32xbf16>
    %cst_152 = arith.constant dense<0.000000e+00> : vector<4x32xf32>
    %298 = tpu.matmul %296, %297, %cst_152 {dimension_numbers = #tpu.dot_dimension_numbers<[1], [0], [0], [1], [0, 0, 1, 1], [], []>} : vector<4x32xbf16>, vector<32x32xbf16>, vector<4x32xf32> -> vector<4x32xf32>
    %299 = arith.addf %295, %298 : vector<4x32xf32>
    %c0_153 = arith.constant 0 : index
    %c0_154 = arith.constant 0 : index
    %300 = vector.load %arg41[%c0_153, %c0_154] : memref<1x32xf32, #tpu.memory_space<vmem>>, vector<1x32xf32>
    %301 = vector.broadcast %300 : vector<1x32xf32> to vector<4x32xf32>
    %302 = arith.addf %299, %301 : vector<4x32xf32>
    %cst_155 = arith.constant 5.000000e-01 : f32
    %303 = vector.broadcast %cst_155 : f32 to vector<4x32xf32>
    %304 = arith.mulf %303, %302 : vector<4x32xf32>
    %305 = math.tanh %304 : vector<4x32xf32>
    %cst_156 = arith.constant 1.000000e+00 : f32
    %306 = vector.broadcast %cst_156 : f32 to vector<4x32xf32>
    %307 = arith.addf %305, %306 : vector<4x32xf32>
    %cst_157 = arith.constant 5.000000e-01 : f32
    %308 = vector.broadcast %cst_157 : f32 to vector<4x32xf32>
    %309 = arith.mulf %308, %307 : vector<4x32xf32>
    %310 = arith.mulf %302, %309 : vector<4x32xf32>
    %311 = arith.truncf %310 : vector<4x32xf32> to vector<4x32xbf16>
    %c0_158 = arith.constant 0 : index
    %c0_159 = arith.constant 0 : index
    %312 = vector.load %arg42[%c0_158, %c0_159] : memref<32x4xbf16, #tpu.memory_space<vmem>>, vector<32x4xbf16>
    %cst_160 = arith.constant dense<0.000000e+00> : vector<4x4xf32>
    %313 = tpu.matmul %311, %312, %cst_160 {dimension_numbers = #tpu.dot_dimension_numbers<[1], [0], [0], [1], [0, 0, 1, 1], [], []>} : vector<4x32xbf16>, vector<32x4xbf16>, vector<4x4xf32> -> vector<4x4xf32>
    %c0_161 = arith.constant 0 : index
    %c0_162 = arith.constant 0 : index
    %314 = vector.load %arg43[%c0_161, %c0_162] : memref<1x4xf32, #tpu.memory_space<vmem>>, vector<1x4xf32>
    %315 = vector.broadcast %314 : vector<1x4xf32> to vector<4x4xf32>
    %316 = arith.addf %313, %315 : vector<4x4xf32>
    %c0_163 = arith.constant 0 : index
    %c0_164 = arith.constant 0 : index
    %317 = vector.load %arg48[%c0_163, %c0_164] : memref<4x4xf32, #tpu.memory_space<vmem>>, vector<4x4xf32>
    tpu.vector_store %arg48[%c0_163, %c0_164], %316 {strides = array<i32>} : memref<4x4xf32, #tpu.memory_space<vmem>>, vector<4x4xf32>,
    return
  }
}

</mosaic_0001>

<llo_original>
// kernel: tpu_custom_call.1
$region0: #{tpu_custom_call.1}
  #allocation0 [shape = 'u32[]', space=smem, size = 0x4, offset = 0x4, fixed_abs, tag = 'smem constant byte address 0x4 - core index']
  #allocation1 [shape = 'u32[72,128]{1,0:T(1,128)}', space=vmem, size = 0x9000, scoped, tag = 'internal scratch']
  #allocation2 [shape = 'f32[1,1]{1,0:T(1,128)S(1)}', space=vmem, size = 0x200, scoped, tag = 'scoped memory for tpu_custom_call.1']
  #allocation3 [shape = 'f32[1,1]{1,0:T(1,128)S(1)}', space=vmem, size = 0x200, scoped, tag = 'scoped memory for tpu_custom_call.1']
  #allocation4 [shape = 'f32[1,1]{1,0:T(1,128)S(1)}', space=vmem, size = 0x200, scoped, tag = 'scoped memory for tpu_custom_call.1']
  #allocation5 [shape = 'f32[1,1]{1,0:T(1,128)S(1)}', space=vmem, size = 0x200, scoped, tag = 'scoped memory for tpu_custom_call.1']
  %s0 = inlined_call_operand.smem [shape: u32[49], index: -1, kind: input, shape index: {}]
  %s1 = sld [smem:[%s0]]
  %s2 = scalar_lea.smem %s0, 1
  %s3 = sld [smem:[%s2]]
  %s4 = scalar_lea.smem %s0, 2
  %s5 = sld [smem:[%s4]]
  %s6 = scalar_lea.smem %s0, 3
  %s7 = sld [smem:[%s6]]
  %s8 = scalar_lea.smem %s0, 4
  %s9 = sld [smem:[%s8]]
  %s10 = scalar_lea.smem %s0, 5
  %s11 = sld [smem:[%s10]]
  %s12 = scalar_lea.smem %s0, 6
  %s13 = sld [smem:[%s12]]
  %s14 = scalar_lea.smem %s0, 7
  %s15 = sld [smem:[%s14]]
  %s16 = scalar_lea.smem %s0, 8
  %s17 = sld [smem:[%s16]]
  %s18 = scalar_lea.smem %s0, 9
  %s19 = sld [smem:[%s18]]
  %s20 = scalar_lea.smem %s0, 10
  %s21 = sld [smem:[%s20]]
  %s22 = scalar_lea.smem %s0, 11
  %s23 = sld [smem:[%s22]]
  %s24 = scalar_lea.smem %s0, 12
  %s25 = sld [smem:[%s24]]
  %s26 = scalar_lea.smem %s0, 13
  %s27 = sld [smem:[%s26]]
  %s28 = scalar_lea.smem %s0, 14
  %s29 = sld [smem:[%s28]]
  %s30 = scalar_lea.smem %s0, 15
  %s31 = sld [smem:[%s30]]
  %s32 = scalar_lea.smem %s0, 16
  %s33 = sld [smem:[%s32]]
  %s34 = scalar_lea.smem %s0, 17
  %s35 = sld [smem:[%s34]]
  %s36 = scalar_lea.smem %s0, 18
  %s37 = sld [smem:[%s36]]
  %s38 = scalar_lea.smem %s0, 19
  %s39 = sld [smem:[%s38]]
  %s40 = scalar_lea.smem %s0, 20
  %s41 = sld [smem:[%s40]]
  %s42 = scalar_lea.smem %s0, 21
  %s43 = sld [smem:[%s42]]
  %s44 = scalar_lea.smem %s0, 22
  %s45 = sld [smem:[%s44]]
  %s46 = scalar_lea.smem %s0, 23
  %s47 = sld [smem:[%s46]]
  %s48 = scalar_lea.smem %s0, 24
  %s49 = sld [smem:[%s48]]
  %s50 = scalar_lea.smem %s0, 25
  %s51 = sld [smem:[%s50]]
  %s52 = scalar_lea.smem %s0, 26
  %s53 = sld [smem:[%s52]]
  %s54 = scalar_lea.smem %s0, 27
  %s55 = sld [smem:[%s54]]
  %s56 = scalar_lea.smem %s0, 28
  %s57 = sld [smem:[%s56]]
  %s58 = scalar_lea.smem %s0, 29
  %s59 = sld [smem:[%s58]]
  %s60 = scalar_lea.smem %s0, 30
  %s61 = sld [smem:[%s60]]
  %s62 = scalar_lea.smem %s0, 31
  %s63 = sld [smem:[%s62]]
  %s64 = scalar_lea.smem %s0, 32
  %s65 = sld [smem:[%s64]]
  %s66 = scalar_lea.smem %s0, 33
  %s67 = sld [smem:[%s66]]
  %s68 = scalar_lea.smem %s0, 34
  %s69 = sld [smem:[%s68]]
  %s70 = scalar_lea.smem %s0, 35
  %s71 = sld [smem:[%s70]]
  %s72 = scalar_lea.smem %s0, 36
  %s73 = sld [smem:[%s72]]
  %s74 = scalar_lea.smem %s0, 37
  %s75 = sld [smem:[%s74]]
  %s76 = scalar_lea.smem %s0, 38
  %s77 = sld [smem:[%s76]]
  %s78 = scalar_lea.smem %s0, 39
  %s79 = sld [smem:[%s78]]
  %s80 = scalar_lea.smem %s0, 40
  %s81 = sld [smem:[%s80]]
  %s82 = scalar_lea.smem %s0, 41
  %s83 = sld [smem:[%s82]]
  %s84 = scalar_lea.smem %s0, 42
  %s85 = sld [smem:[%s84]]
  %s86 = scalar_lea.smem %s0, 43
  %s87 = sld [smem:[%s86]]
  %s88 = scalar_lea.smem %s0, 44
  %s89 = sld [smem:[%s88]]
  %s90 = scalar_lea.smem %s0, 45
  %s91 = sld [smem:[%s90]]
  %s92 = scalar_lea.smem %s0, 46
  %s93 = sld [smem:[%s92]]
  %s94 = scalar_lea.smem %s0, 47
  %s95 = sld [smem:[%s94]]
  %s96 = scalar_lea.smem %s0, 48
  %s97 = sld [smem:[%s96]]
  %98 = xla_tuple %s89, %s91, %s93, %s95, %s97
  %s99 = sld [smem:[#allocation0]]
  $region270: #{tpu_custom_call.1} parent=0
    _
  %s101 = ssub.s32 1, %s99
  %s102 = scalar_select 0, %s101, %s99
  %v103 = vstv %s37
  %104 = vst [vmem:[#allocation2] sm:$0x1] %v103
  %v105 = vstv %s47
  %106 = vst [vmem:[#allocation3] sm:$0x1] %v105
  %v107 = vstv %s59
  %108 = vst [vmem:[#allocation4] sm:$0x1] %v107
  %v109 = vstv %s73
  %110 = vst [vmem:[#allocation5] sm:$0x1] %v109
  $region1: #{tpu_custom_call.1} parent=0
    #allocation6 [shape = 'u8[8192]{0}', space=vmem, size = 0x2000, scoped, tag = 'input window, operand 3, single buffered']
    #allocation7 [shape = 's32[1]{0}', space=sflag, size = 0x4, scoped, tag = 'scoped memory for tpu_custom_call.1']
    #allocation8 [shape = 's32[1]{0}', space=sflag, size = 0x4, scoped, tag = 'scoped memory for tpu_custom_call.1']
    #allocation9 [shape = 'u8[8192]{0}', space=vmem, size = 0x2000, scoped, tag = 'input window, operand 19, single buffered']
    #allocation10 [shape = 's32[1]{0}', space=sflag, size = 0x4, scoped, tag = 'scoped memory for tpu_custom_call.1']
    #allocation11 [shape = 'u8[8192]{0}', space=vmem, size = 0x2000, scoped, tag = 'input window, operand 20, single buffered']
    #allocation12 [shape = 'u8[8192]{0}', space=vmem, size = 0x2000, scoped, tag = 'input window, operand 24, single buffered']
    #allocation13 [shape = 's32[1]{0}', space=sflag, size = 0x4, scoped, tag = 'scoped memory for tpu_custom_call.1']
    #allocation14 [shape = 'u8[8192]{0}', space=vmem, size = 0x2000, scoped, tag = 'input window, operand 25, single buffered']
    #allocation15 [shape = 'u8[8192]{0}', space=vmem, size = 0x2000, scoped, tag = 'input window, operand 26, single buffered']
    #allocation16 [shape = 's32[1]{0}', space=sflag, size = 0x4, scoped, tag = 'scoped memory for tpu_custom_call.1']
    #allocation17 [shape = 'u8[8192]{0}', space=vmem, size = 0x2000, scoped, tag = 'input window, operand 30, single buffered']
    #allocation18 [shape = 'u8[8192]{0}', space=vmem, size = 0x2000, scoped, tag = 'input window, operand 32, single buffered']
    #allocation19 [shape = 's32[1]{0}', space=sflag, size = 0x4, scoped, tag = 'scoped memory for tpu_custom_call.1']
    #allocation20 [shape = 'u8[8192]{0}', space=vmem, size = 0x2000, scoped, tag = 'input window, operand 33, single buffered']
    #allocation21 [shape = 'u8[8192]{0}', space=vmem, size = 0x2000, scoped, tag = 'input window, operand 37, single buffered']
    #allocation22 [shape = 's32[1]{0}', space=sflag, size = 0x4, scoped, tag = 'scoped memory for tpu_custom_call.1']
    #allocation23 [shape = 'u8[8192]{0}', space=vmem, size = 0x2000, scoped, tag = 'input window, operand 38, single buffered']
    #allocation24 [shape = 'u8[8192]{0}', space=vmem, size = 0x2000, scoped, tag = 'input window, operand 39, single buffered']
    #allocation25 [shape = 's32[1]{0}', space=sflag, size = 0x4, scoped, tag = 'scoped memory for tpu_custom_call.1']
    #allocation26 [shape = 'u8[8192]{0}', space=vmem, size = 0x2000, scoped, tag = 'input window, operand 40, single buffered']
    #allocation27 [shape = 'u8[512]{0}', space=vmem, size = 0x400, scoped, tag = 'output window, operand 0, single buffered']
    #allocation28 [shape = 'u8[2048]{0}', space=vmem, size = 0x800, scoped, tag = 'output window, operand 1, single buffered']
    #allocation29 [shape = 's32[1]{0}', space=sflag, size = 0x4, scoped, tag = 'scoped memory for tpu_custom_call.1']
    #allocation30 [shape = 'u8[512]{0}', space=vmem, size = 0x400, scoped, tag = 'output window, operand 2, single buffered']
    #allocation31 [shape = 'u8[512]{0}', space=vmem, size = 0x400, scoped, tag = 'output window, operand 3, single buffered']
    #allocation32 [shape = 's32[1]{0}', space=sflag, size = 0x4, scoped, tag = 'scoped memory for tpu_custom_call.1']
    #allocation33 [shape = 'u8[2048]{0}', space=vmem, size = 0x800, scoped, tag = 'output window, operand 4, single buffered']
    %111 = vsyncpa [#allocation7], 0
    %112 = vsyncpa [#allocation10], 0
    %113 = vsyncpa [#allocation13], 0
    %114 = vsyncpa [#allocation16], 0
    %115 = vsyncpa [#allocation19], 0
    %116 = vsyncpa [#allocation22], 0
    %117 = vsyncpa [#allocation25], 0
    %118 = vsyncpa [#allocation8], 0
    %119 = vsyncpa [#allocation29], 0
    %120 = vsyncpa [#allocation32], 0
    // Predicated region
    $region2: #{tpu_custom_call.1} parent=1 // pred_check
      _
    $region3: #{tpu_custom_call.1} parent=1 // pred_check_branch
      %122 = sbr.rel (0) target = $region5
    $region4: #{tpu_custom_call.1} parent=1 // pred_region
      _
    $region5: #{tpu_custom_call.1} parent=1 // pred_fallthru
      _
    // Predicated region
    $region6: #{tpu_custom_call.1} parent=1 // pred_check
      _
    $region7: #{tpu_custom_call.1} parent=1 // pred_check_branch
      %124 = sbr.rel (0) target = $region9
    $region8: #{tpu_custom_call.1} parent=1 // pred_region
      _
    $region9: #{tpu_custom_call.1} parent=1 // pred_fallthru
      _
    // Predicated region
    $region10: #{tpu_custom_call.1} parent=1 // pred_check
      _
    $region11: #{tpu_custom_call.1} parent=1 // pred_check_branch
      %126 = sbr.rel (0) target = $region13
    $region12: #{tpu_custom_call.1} parent=1 // pred_region
      _
    $region13: #{tpu_custom_call.1} parent=1 // pred_fallthru
      _
    // Predicated region
    $region14: #{tpu_custom_call.1} parent=1 // pred_check
      _
    $region15: #{tpu_custom_call.1} parent=1 // pred_check_branch
      %128 = sbr.rel (0) target = $region17
    $region16: #{tpu_custom_call.1} parent=1 // pred_region
      %130 = vsyncadd [#allocation7], 0
      %s131 = sshll.u32 %s7, 4
      %s132 = int_to_ptr.hbm [resolvable:$true] %s131
      %s133 = sshll.u32 [#allocation6], 4
      %s134 = int_to_ptr.vmem [resolvable:$true] %s133
      %139 = dma.hbm_to_vmem [thread:$0]  %s132, 256, %s134, [#allocation7], 128, 128, 8
    $region17: #{tpu_custom_call.1} parent=1 // pred_fallthru
      _
    // Predicated region
    $region18: #{tpu_custom_call.1} parent=1 // pred_check
      _
    $region19: #{tpu_custom_call.1} parent=1 // pred_check_branch
      %141 = sbr.rel (0) target = $region21
    $region20: #{tpu_custom_call.1} parent=1 // pred_region
      _
    $region21: #{tpu_custom_call.1} parent=1 // pred_fallthru
      _
    // Predicated region
    $region22: #{tpu_custom_call.1} parent=1 // pred_check
      _
    $region23: #{tpu_custom_call.1} parent=1 // pred_check_branch
      %143 = sbr.rel (0) target = $region25
    $region24: #{tpu_custom_call.1} parent=1 // pred_region
      _
    $region25: #{tpu_custom_call.1} parent=1 // pred_fallthru
      _
    // Predicated region
    $region26: #{tpu_custom_call.1} parent=1 // pred_check
      _
    $region27: #{tpu_custom_call.1} parent=1 // pred_check_branch
      %145 = sbr.rel (0) target = $region29
    $region28: #{tpu_custom_call.1} parent=1 // pred_region
      _
    $region29: #{tpu_custom_call.1} parent=1 // pred_fallthru
      _
    // Predicated region
    $region30: #{tpu_custom_call.1} parent=1 // pred_check
      _
    $region31: #{tpu_custom_call.1} parent=1 // pred_check_branch
      %147 = sbr.rel (0) target = $region33
    $region32: #{tpu_custom_call.1} parent=1 // pred_region
      _
    $region33: #{tpu_custom_call.1} parent=1 // pred_fallthru
      _
    // Predicated region
    $region34: #{tpu_custom_call.1} parent=1 // pred_check
      _
    $region35: #{tpu_custom_call.1} parent=1 // pred_check_branch
      %149 = sbr.rel (0) target = $region37
    $region36: #{tpu_custom_call.1} parent=1 // pred_region
      _
    $region37: #{tpu_custom_call.1} parent=1 // pred_fallthru
      _
    // Predicated region
    $region38: #{tpu_custom_call.1} parent=1 // pred_check
      _
    $region39: #{tpu_custom_call.1} parent=1 // pred_check_branch
      %151 = sbr.rel (0) target = $region41
    $region40: #{tpu_custom_call.1} parent=1 // pred_region
      _
    $region41: #{tpu_custom_call.1} parent=1 // pred_fallthru
      _
    // Predicated region
    $region42: #{tpu_custom_call.1} parent=1 // pred_check
      _
    $region43: #{tpu_custom_call.1} parent=1 // pred_check_branch
      %153 = sbr.rel (0) target = $region45
    $region44: #{tpu_custom_call.1} parent=1 // pred_region
      _
    $region45: #{tpu_custom_call.1} parent=1 // pred_fallthru
      _
    // Predicated region
    $region46: #{tpu_custom_call.1} parent=1 // pred_check
      _
    $region47: #{tpu_custom_call.1} parent=1 // pred_check_branch
      %155 = sbr.rel (0) target = $region49
    $region48: #{tpu_custom_call.1} parent=1 // pred_region
      _
    $region49: #{tpu_custom_call.1} parent=1 // pred_fallthru
      _
    // Predicated region
    $region50: #{tpu_custom_call.1} parent=1 // pred_check
      _
    $region51: #{tpu_custom_call.1} parent=1 // pred_check_branch
      %157 = sbr.rel (0) target = $region53
    $region52: #{tpu_custom_call.1} parent=1 // pred_region
      _
    $region53: #{tpu_custom_call.1} parent=1 // pred_fallthru
      _
    // Predicated region
    $region54: #{tpu_custom_call.1} parent=1 // pred_check
      _
    $region55: #{tpu_custom_call.1} parent=1 // pred_check_branch
      %159 = sbr.rel (0) target = $region57
    $region56: #{tpu_custom_call.1} parent=1 // pred_region
      _
    $region57: #{tpu_custom_call.1} parent=1 // pred_fallthru
      _
    // Predicated region
    $region58: #{tpu_custom_call.1} parent=1 // pred_check
      _
    $region59: #{tpu_custom_call.1} parent=1 // pred_check_branch
      %161 = sbr.rel (0) target = $region61
    $region60: #{tpu_custom_call.1} parent=1 // pred_region
      _
    $region61: #{tpu_custom_call.1} parent=1 // pred_fallthru
      _
    // Predicated region
    $region62: #{tpu_custom_call.1} parent=1 // pred_check
      _
    $region63: #{tpu_custom_call.1} parent=1 // pred_check_branch
      %163 = sbr.rel (0) target = $region65
    $region64: #{tpu_custom_call.1} parent=1 // pred_region
      _
    $region65: #{tpu_custom_call.1} parent=1 // pred_fallthru
      _
    // Predicated region
    $region66: #{tpu_custom_call.1} parent=1 // pred_check
      _
    $region67: #{tpu_custom_call.1} parent=1 // pred_check_branch
      %165 = sbr.rel (0) target = $region69
    $region68: #{tpu_custom_call.1} parent=1 // pred_region
      _
    $region69: #{tpu_custom_call.1} parent=1 // pred_fallthru
      _
    // Predicated region
    $region70: #{tpu_custom_call.1} parent=1 // pred_check
      _
    $region71: #{tpu_custom_call.1} parent=1 // pred_check_branch
      %167 = sbr.rel (0) target = $region73
    $region72: #{tpu_custom_call.1} parent=1 // pred_region
      _
    $region73: #{tpu_custom_call.1} parent=1 // pred_fallthru
      _
    // Predicated region
    $region74: #{tpu_custom_call.1} parent=1 // pred_check
      _
    $region75: #{tpu_custom_call.1} parent=1 // pred_check_branch
      %169 = sbr.rel (0) target = $region77
    $region76: #{tpu_custom_call.1} parent=1 // pred_region
      _
    $region77: #{tpu_custom_call.1} parent=1 // pred_fallthru
      _
    // Predicated region
    $region78: #{tpu_custom_call.1} parent=1 // pred_check
      _
    $region79: #{tpu_custom_call.1} parent=1 // pred_check_branch
      %171 = sbr.rel (0) target = $region81
    $region80: #{tpu_custom_call.1} parent=1 // pred_region
      %173 = vsyncadd [#allocation10], 0
      %s174 = sshll.u32 %s39, 4
      %s175 = int_to_ptr.hbm [resolvable:$true] %s174
      %s176 = sshll.u32 [#allocation9], 4
      %s177 = int_to_ptr.vmem [resolvable:$true] %s176
      %182 = dma.hbm_to_vmem [thread:$0]  %s175, 256, %s177, [#allocation10], 64, 64, 4
    $region81: #{tpu_custom_call.1} parent=1 // pred_fallthru
      _
    // Predicated region
    $region82: #{tpu_custom_call.1} parent=1 // pred_check
      _
    $region83: #{tpu_custom_call.1} parent=1 // pred_check_branch
      %184 = sbr.rel (0) target = $region85
    $region84: #{tpu_custom_call.1} parent=1 // pred_region
      %186 = vsyncadd [#allocation10], 0
      %s187 = sshll.u32 %s41, 4
      %s188 = int_to_ptr.hbm [resolvable:$true] %s187
      %s189 = sshll.u32 [#allocation11], 4
      %s190 = int_to_ptr.vmem [resolvable:$true] %s189
      %195 = dma.hbm_to_vmem [thread:$0]  %s188, 256, %s190, [#allocation10], 64, 64, 4
    $region85: #{tpu_custom_call.1} parent=1 // pred_fallthru
      _
    // Predicated region
    $region86: #{tpu_custom_call.1} parent=1 // pred_check
      _
    $region87: #{tpu_custom_call.1} parent=1 // pred_check_branch
      %197 = sbr.rel (0) target = $region89
    $region88: #{tpu_custom_call.1} parent=1 // pred_region
      _
    $region89: #{tpu_custom_call.1} parent=1 // pred_fallthru
      _
    // Predicated region
    $region90: #{tpu_custom_call.1} parent=1 // pred_check
      _
    $region91: #{tpu_custom_call.1} parent=1 // pred_check_branch
      %199 = sbr.rel (0) target = $region93
    $region92: #{tpu_custom_call.1} parent=1 // pred_region
      _
    $region93: #{tpu_custom_call.1} parent=1 // pred_fallthru
      _
    // Predicated region
    $region94: #{tpu_custom_call.1} parent=1 // pred_check
      _
    $region95: #{tpu_custom_call.1} parent=1 // pred_check_branch
      %201 = sbr.rel (0) target = $region97
    $region96: #{tpu_custom_call.1} parent=1 // pred_region
      _
    $region97: #{tpu_custom_call.1} parent=1 // pred_fallthru
      _
    // Predicated region
    $region98: #{tpu_custom_call.1} parent=1 // pred_check
      _
    $region99: #{tpu_custom_call.1} parent=1 // pred_check_branch
      %203 = sbr.rel (0) target = $region101
    $region100: #{tpu_custom_call.1} parent=1 // pred_region
      %205 = vsyncadd [#allocation13], 0
      %s206 = sshll.u32 %s49, 4
      %s207 = int_to_ptr.hbm [resolvable:$true] %s206
      %s208 = sshll.u32 [#allocation12], 4
      %s209 = int_to_ptr.vmem [resolvable:$true] %s208
      %214 = dma.hbm_to_vmem [thread:$0]  %s207, 256, %s209, [#allocation13], 64, 64, 4
    $region101: #{tpu_custom_call.1} parent=1 // pred_fallthru
      _
    // Predicated region
    $region102: #{tpu_custom_call.1} parent=1 // pred_check
      _
    $region103: #{tpu_custom_call.1} parent=1 // pred_check_branch
      %216 = sbr.rel (0) target = $region105
    $region104: #{tpu_custom_call.1} parent=1 // pred_region
      %218 = vsyncadd [#allocation13], 0
      %s219 = sshll.u32 %s51, 4
      %s220 = int_to_ptr.hbm [resolvable:$true] %s219
      %s221 = sshll.u32 [#allocation14], 4
      %s222 = int_to_ptr.vmem [resolvable:$true] %s221
      %227 = dma.hbm_to_vmem [thread:$0]  %s220, 256, %s222, [#allocation13], 64, 64, 4
    $region105: #{tpu_custom_call.1} parent=1 // pred_fallthru
      _
    // Predicated region
    $region106: #{tpu_custom_call.1} parent=1 // pred_check
      _
    $region107: #{tpu_custom_call.1} parent=1 // pred_check_branch
      %229 = sbr.rel (0) target = $region109
    $region108: #{tpu_custom_call.1} parent=1 // pred_region
      %231 = vsyncadd [#allocation16], 0
      %s232 = sshll.u32 %s53, 4
      %s233 = int_to_ptr.hbm [resolvable:$true] %s232
      %s234 = sshll.u32 [#allocation15], 4
      %s235 = int_to_ptr.vmem [resolvable:$true] %s234
      %240 = dma.hbm_to_vmem [thread:$0]  %s233, 256, %s235, [#allocation16], 64, 64, 4
    $region109: #{tpu_custom_call.1} parent=1 // pred_fallthru
      _
    // Predicated region
    $region110: #{tpu_custom_call.1} parent=1 // pred_check
      _
    $region111: #{tpu_custom_call.1} parent=1 // pred_check_branch
      %242 = sbr.rel (0) target = $region113
    $region112: #{tpu_custom_call.1} parent=1 // pred_region
      _
    $region113: #{tpu_custom_call.1} parent=1 // pred_fallthru
      _
    // Predicated region
    $region114: #{tpu_custom_call.1} parent=1 // pred_check
      _
    $region115: #{tpu_custom_call.1} parent=1 // pred_check_branch
      %244 = sbr.rel (0) target = $region117
    $region116: #{tpu_custom_call.1} parent=1 // pred_region
      _
    $region117: #{tpu_custom_call.1} parent=1 // pred_fallthru
      _
    // Predicated region
    $region118: #{tpu_custom_call.1} parent=1 // pred_check
      _
    $region119: #{tpu_custom_call.1} parent=1 // pred_check_branch
      %246 = sbr.rel (0) target = $region121
    $region120: #{tpu_custom_call.1} parent=1 // pred_region
      _
    $region121: #{tpu_custom_call.1} parent=1 // pred_fallthru
      _
    // Predicated region
    $region122: #{tpu_custom_call.1} parent=1 // pred_check
      _
    $region123: #{tpu_custom_call.1} parent=1 // pred_check_branch
      %248 = sbr.rel (0) target = $region125
    $region124: #{tpu_custom_call.1} parent=1 // pred_region
      %250 = vsyncadd [#allocation16], 0
      %s251 = sshll.u32 %s61, 4
      %s252 = int_to_ptr.hbm [resolvable:$true] %s251
      %s253 = sshll.u32 [#allocation17], 4
      %s254 = int_to_ptr.vmem [resolvable:$true] %s253
      %259 = dma.hbm_to_vmem [thread:$0]  %s252, 256, %s254, [#allocation16], 64, 64, 4
    $region125: #{tpu_custom_call.1} parent=1 // pred_fallthru
      _
    // Predicated region
    $region126: #{tpu_custom_call.1} parent=1 // pred_check
      _
    $region127: #{tpu_custom_call.1} parent=1 // pred_check_branch
      %261 = sbr.rel (0) target = $region129
    $region128: #{tpu_custom_call.1} parent=1 // pred_region
      _
    $region129: #{tpu_custom_call.1} parent=1 // pred_fallthru
      _
    // Predicated region
    $region130: #{tpu_custom_call.1} parent=1 // pred_check
      _
    $region131: #{tpu_custom_call.1} parent=1 // pred_check_branch
      %263 = sbr.rel (0) target = $region133
    $region132: #{tpu_custom_call.1} parent=1 // pred_region
      %265 = vsyncadd [#allocation19], 0
      %s266 = sshll.u32 %s65, 4
      %s267 = int_to_ptr.hbm [resolvable:$true] %s266
      %s268 = sshll.u32 [#allocation18], 4
      %s269 = int_to_ptr.vmem [resolvable:$true] %s268
      %274 = dma.hbm_to_vmem [thread:$0]  %s267, 256, %s269, [#allocation19], 64, 64, 4
    $region133: #{tpu_custom_call.1} parent=1 // pred_fallthru
      _
    // Predicated region
    $region134: #{tpu_custom_call.1} parent=1 // pred_check
      _
    $region135: #{tpu_custom_call.1} parent=1 // pred_check_branch
      %276 = sbr.rel (0) target = $region137
    $region136: #{tpu_custom_call.1} parent=1 // pred_region
      %278 = vsyncadd [#allocation19], 0
      %s279 = sshll.u32 %s67, 4
      %s280 = int_to_ptr.hbm [resolvable:$true] %s279
      %s281 = sshll.u32 [#allocation20], 4
      %s282 = int_to_ptr.vmem [resolvable:$true] %s281
      %287 = dma.hbm_to_vmem [thread:$0]  %s280, 256, %s282, [#allocation19], 64, 64, 4
    $region137: #{tpu_custom_call.1} parent=1 // pred_fallthru
      _
    // Predicated region
    $region138: #{tpu_custom_call.1} parent=1 // pred_check
      _
    $region139: #{tpu_custom_call.1} parent=1 // pred_check_branch
      %289 = sbr.rel (0) target = $region141
    $region140: #{tpu_custom_call.1} parent=1 // pred_region
      _
    $region141: #{tpu_custom_call.1} parent=1 // pred_fallthru
      _
    // Predicated region
    $region142: #{tpu_custom_call.1} parent=1 // pred_check
      _
    $region143: #{tpu_custom_call.1} parent=1 // pred_check_branch
      %291 = sbr.rel (0) target = $region145
    $region144: #{tpu_custom_call.1} parent=1 // pred_region
      _
    $region145: #{tpu_custom_call.1} parent=1 // pred_fallthru
      _
    // Predicated region
    $region146: #{tpu_custom_call.1} parent=1 // pred_check
      _
    $region147: #{tpu_custom_call.1} parent=1 // pred_check_branch
      %293 = sbr.rel (0) target = $region149
    $region148: #{tpu_custom_call.1} parent=1 // pred_region
      _
    $region149: #{tpu_custom_call.1} parent=1 // pred_fallthru
      _
    // Predicated region
    $region150: #{tpu_custom_call.1} parent=1 // pred_check
      _
    $region151: #{tpu_custom_call.1} parent=1 // pred_check_branch
      %295 = sbr.rel (0) target = $region153
    $region152: #{tpu_custom_call.1} parent=1 // pred_region
      %297 = vsyncadd [#allocation22], 0
      %s298 = sshll.u32 %s75, 4
      %s299 = int_to_ptr.hbm [resolvable:$true] %s298
      %s300 = sshll.u32 [#allocation21], 4
      %s301 = int_to_ptr.vmem [resolvable:$true] %s300
      %306 = dma.hbm_to_vmem [thread:$0]  %s299, 256, %s301, [#allocation22], 64, 64, 4
    $region153: #{tpu_custom_call.1} parent=1 // pred_fallthru
      _
    // Predicated region
    $region154: #{tpu_custom_call.1} parent=1 // pred_check
      _
    $region155: #{tpu_custom_call.1} parent=1 // pred_check_branch
      %308 = sbr.rel (0) target = $region157
    $region156: #{tpu_custom_call.1} parent=1 // pred_region
      %310 = vsyncadd [#allocation22], 0
      %s311 = sshll.u32 %s77, 4
      %s312 = int_to_ptr.hbm [resolvable:$true] %s311
      %s313 = sshll.u32 [#allocation23], 4
      %s314 = int_to_ptr.vmem [resolvable:$true] %s313
      %319 = dma.hbm_to_vmem [thread:$0]  %s312, 256, %s314, [#allocation22], 64, 64, 4
    $region157: #{tpu_custom_call.1} parent=1 // pred_fallthru
      _
    // Predicated region
    $region158: #{tpu_custom_call.1} parent=1 // pred_check
      _
    $region159: #{tpu_custom_call.1} parent=1 // pred_check_branch
      %321 = sbr.rel (0) target = $region161
    $region160: #{tpu_custom_call.1} parent=1 // pred_region
      %323 = vsyncadd [#allocation25], 0
      %s324 = sshll.u32 %s79, 4
      %s325 = int_to_ptr.hbm [resolvable:$true] %s324
      %s326 = sshll.u32 [#allocation24], 4
      %s327 = int_to_ptr.vmem [resolvable:$true] %s326
      %332 = dma.hbm_to_vmem [thread:$0]  %s325, 256, %s327, [#allocation25], 64, 64, 4
    $region161: #{tpu_custom_call.1} parent=1 // pred_fallthru
      _
    // Predicated region
    $region162: #{tpu_custom_call.1} parent=1 // pred_check
      _
    $region163: #{tpu_custom_call.1} parent=1 // pred_check_branch
      %334 = sbr.rel (0) target = $region165
    $region164: #{tpu_custom_call.1} parent=1 // pred_region
      %336 = vsyncadd [#allocation25], 0
      %s337 = sshll.u32 %s81, 4
      %s338 = int_to_ptr.hbm [resolvable:$true] %s337
      %s339 = sshll.u32 [#allocation26], 4
      %s340 = int_to_ptr.vmem [resolvable:$true] %s339
      %345 = dma.hbm_to_vmem [thread:$0]  %s338, 256, %s340, [#allocation25], 64, 64, 4
    $region165: #{tpu_custom_call.1} parent=1 // pred_fallthru
      _
    // Predicated region
    $region166: #{tpu_custom_call.1} parent=1 // pred_check
      _
    $region167: #{tpu_custom_call.1} parent=1 // pred_check_branch
      %347 = sbr.rel (0) target = $region169
    $region168: #{tpu_custom_call.1} parent=1 // pred_region
      _
    $region169: #{tpu_custom_call.1} parent=1 // pred_fallthru
      _
    // Predicated region
    $region170: #{tpu_custom_call.1} parent=1 // pred_check
      _
    $region171: #{tpu_custom_call.1} parent=1 // pred_check_branch
      %349 = sbr.rel (0) target = $region173
    $region172: #{tpu_custom_call.1} parent=1 // pred_region
      _
    $region173: #{tpu_custom_call.1} parent=1 // pred_fallthru
      _
    // Predicated region
    $region174: #{tpu_custom_call.1} parent=1 // pred_check
      _
    $region175: #{tpu_custom_call.1} parent=1 // pred_check_branch
      %351 = sbr.rel (0) target = $region177
    $region176: #{tpu_custom_call.1} parent=1 // pred_region
      _
    $region177: #{tpu_custom_call.1} parent=1 // pred_fallthru
      _
    // Predicated region
    $region178: #{tpu_custom_call.1} parent=1 // pred_check
      _
    $region179: #{tpu_custom_call.1} parent=1 // pred_check_branch
      %353 = sbr.rel (0) target = $region181
    $region180: #{tpu_custom_call.1} parent=1 // pred_region
      %355 = dma.done [#allocation7], 256
    $region181: #{tpu_custom_call.1} parent=1 // pred_fallthru
      _
    // Predicated region
    $region182: #{tpu_custom_call.1} parent=1 // pred_check
      _
    $region183: #{tpu_custom_call.1} parent=1 // pred_check_branch
      %357 = sbr.rel (0) target = $region185
    $region184: #{tpu_custom_call.1} parent=1 // pred_region
      %359 = dma.done [#allocation10], 256
    $region185: #{tpu_custom_call.1} parent=1 // pred_fallthru
      _
    // Predicated region
    $region186: #{tpu_custom_call.1} parent=1 // pred_check
      _
    $region187: #{tpu_custom_call.1} parent=1 // pred_check_branch
      %361 = sbr.rel (0) target = $region189
    $region188: #{tpu_custom_call.1} parent=1 // pred_region
      %363 = dma.done [#allocation10], 256
    $region189: #{tpu_custom_call.1} parent=1 // pred_fallthru
      _
    // Predicated region
    $region190: #{tpu_custom_call.1} parent=1 // pred_check
      _
    $region191: #{tpu_custom_call.1} parent=1 // pred_check_branch
      %365 = sbr.rel (0) target = $region193
    $region192: #{tpu_custom_call.1} parent=1 // pred_region
      %367 = dma.done [#allocation13], 256
    $region193: #{tpu_custom_call.1} parent=1 // pred_fallthru
      _
    // Predicated region
    $region194: #{tpu_custom_call.1} parent=1 // pred_check
      _
    $region195: #{tpu_custom_call.1} parent=1 // pred_check_branch
      %369 = sbr.rel (0) target = $region197
    $region196: #{tpu_custom_call.1} parent=1 // pred_region
      %371 = dma.done [#allocation13], 256
    $region197: #{tpu_custom_call.1} parent=1 // pred_fallthru
      _
    // Predicated region
    $region198: #{tpu_custom_call.1} parent=1 // pred_check
      _
    $region199: #{tpu_custom_call.1} parent=1 // pred_check_branch
      %373 = sbr.rel (0) target = $region201
    $region200: #{tpu_custom_call.1} parent=1 // pred_region
      %375 = dma.done [#allocation16], 256
    $region201: #{tpu_custom_call.1} parent=1 // pred_fallthru
      _
    // Predicated region
    $region202: #{tpu_custom_call.1} parent=1 // pred_check
      _
    $region203: #{tpu_custom_call.1} parent=1 // pred_check_branch
      %377 = sbr.rel (0) target = $region205
    $region204: #{tpu_custom_call.1} parent=1 // pred_region
      %379 = dma.done [#allocation16], 256
    $region205: #{tpu_custom_call.1} parent=1 // pred_fallthru
      _
    // Predicated region
    $region206: #{tpu_custom_call.1} parent=1 // pred_check
      _
    $region207: #{tpu_custom_call.1} parent=1 // pred_check_branch
      %381 = sbr.rel (0) target = $region209
    $region208: #{tpu_custom_call.1} parent=1 // pred_region
      %383 = dma.done [#allocation19], 256
    $region209: #{tpu_custom_call.1} parent=1 // pred_fallthru
      _
    // Predicated region
    $region210: #{tpu_custom_call.1} parent=1 // pred_check
      _
    $region211: #{tpu_custom_call.1} parent=1 // pred_check_branch
      %385 = sbr.rel (0) target = $region213
    $region212: #{tpu_custom_call.1} parent=1 // pred_region
      %387 = dma.done [#allocation19], 256
    $region213: #{tpu_custom_call.1} parent=1 // pred_fallthru
      _
    // Predicated region
    $region214: #{tpu_custom_call.1} parent=1 // pred_check
      _
    $region215: #{tpu_custom_call.1} parent=1 // pred_check_branch
      %389 = sbr.rel (0) target = $region217
    $region216: #{tpu_custom_call.1} parent=1 // pred_region
      %391 = dma.done [#allocation22], 256
    $region217: #{tpu_custom_call.1} parent=1 // pred_fallthru
      _
    // Predicated region
    $region218: #{tpu_custom_call.1} parent=1 // pred_check
      _
    $region219: #{tpu_custom_call.1} parent=1 // pred_check_branch
      %393 = sbr.rel (0) target = $region221
    $region220: #{tpu_custom_call.1} parent=1 // pred_region
      %395 = dma.done [#allocation22], 256
    $region221: #{tpu_custom_call.1} parent=1 // pred_fallthru
      _
    // Predicated region
    $region222: #{tpu_custom_call.1} parent=1 // pred_check
      _
    $region223: #{tpu_custom_call.1} parent=1 // pred_check_branch
      %397 = sbr.rel (0) target = $region225
    $region224: #{tpu_custom_call.1} parent=1 // pred_region
      %399 = dma.done [#allocation25], 256
    $region225: #{tpu_custom_call.1} parent=1 // pred_fallthru
      _
    // Predicated region
    $region226: #{tpu_custom_call.1} parent=1 // pred_check
      _
    $region227: #{tpu_custom_call.1} parent=1 // pred_check_branch
      %401 = sbr.rel (0) target = $region229
    $region228: #{tpu_custom_call.1} parent=1 // pred_region
      %403 = dma.done [#allocation25], 256
    $region229: #{tpu_custom_call.1} parent=1 // pred_fallthru
      _
    %v405 = vld [vmem:[%s1] sm:$0x3f]
    %v406 = vpack.c.bf16 %v405, %v405
    %v407 = vld [vmem:[%s31] sm:$0xf]
    %v408 = vld [vmem:[%s31 + $0x4] sm:$0xf]
    %v409 = vld [vmem:[%s31 + $0x8] sm:$0xf]
    %v410 = vld [vmem:[%s31 + $0xc] sm:$0xf]
    %v411 = vld [vmem:[%s33] sm:$0x1]
    %v413 = vperm.slane %v411, 0
    %v419 = vunpack.c.l.b16 %v407
    %v420 = vunpack.c.l.b16 %v408
    %v421 = vunpack.c.l.b16 %v409
    %v422 = vunpack.c.l.b16 %v410
    %v423 = vpack.c.b16 %v420, %v419
    %v424 = vpack.c.b16 %v422, %v421
    %vm427 = vcmask 261120
    %v429 = vsel %vm427, %v406, 0
    %431 = vmatpush.bf16.msra.mxu0 0
    %432 = vmatpush.bf16.msra.mxu0 0
    %433 = vmatpush.bf16.msra.mxu0 0
    %434 = vmatpush.bf16.msra.mxu0 0
    %435 = vmatpush.bf16.msra.mxu0 0
    %436 = vmatpush.bf16.msra.mxu0 0
    %437 = vmatpush.bf16.msra.mxu0 %v424
    %438 = vmatpush.bf16.msra.mxu0 %v423
    %439 = vmatmul.bf16.gmra.mxu0 %v429
    %v440 = vpop.f32.mrf.mxu0
    %v441 = vadd.f32 %v413, %v440
    %v442 = vpop.f32.mrf.mxu0
    %443 = vdwg.mxu0
    %v444 = vmul.f32 %v441, 0.5
    %v445 = vtanh.pop %v444
    %v446 = vadd.f32 %v445, 1.0
    %v447 = vmul.f32 %v446, 0.5
    %v448 = vmul.f32 %v441, %v447
    %v449 = vld [vmem:[%s35] sm:$0x1]
    %v450 = vld [vmem:[#allocation2] sm:$0x1]
    %451 = vxpose.xlu0.b32.start [1/16] %v448, 128
    %452 = vxpose.xlu0.b32.cont [2/16] 0.0, 128
    %453 = vxpose.xlu0.b32.cont [3/16] 0.0, 128
    %454 = vxpose.xlu0.b32.cont [4/16] 0.0, 128
    %455 = vxpose.xlu0.b32.cont [5/16] 0.0, 128
    %456 = vxpose.xlu0.b32.cont [6/16] 0.0, 128
    %457 = vxpose.xlu0.b32.cont [7/16] 0.0, 128
    %458 = vxpose.xlu0.b32.cont [8/16] 0.0, 128
    %459 = vxpose.xlu0.b32.cont [9/16] 0.0, 128
    %460 = vxpose.xlu0.b32.cont [10/16] 0.0, 128
    %461 = vxpose.xlu0.b32.cont [11/16] 0.0, 128
    %462 = vxpose.xlu0.b32.cont [12/16] 0.0, 128
    %463 = vxpose.xlu0.b32.cont [13/16] 0.0, 128
    %464 = vxpose.xlu0.b32.cont [14/16] 0.0, 128
    %465 = vxpose.xlu0.b32.cont [15/16] 0.0, 128
    %466 = vxpose.xlu0.b32.end [16/16] 0.0, 128
    %v467 = vpop.trf.xlu0
    %v468 = vpop.trf.xlu0
    %v469 = vpop.trf.xlu0
    %v470 = vpop.trf.xlu0
    %v471 = vpop.trf.xlu0
    %v472 = vpop.trf.xlu0
    %v473 = vpop.trf.xlu0
    %v474 = vpop.trf.xlu0
    %v475 = vpop.trf.xlu0
    %v476 = vpop.trf.xlu0
    %v477 = vpop.trf.xlu0
    %v478 = vpop.trf.xlu0
    %v479 = vpop.trf.xlu0
    %v480 = vpop.trf.xlu0
    %v481 = vpop.trf.xlu0
    %v482 = vpop.trf.xlu0
    %v483 = vpack.c.bf16 %v468, %v467
    %v484 = vpack.c.bf16 %v470, %v469
    %486 = vset.pattern.permute.xlu0 0
    %487 = vperm.xlu0 %486, %v450
    %v488 = vpop.permute.xlu0 %487
    %v490 = vperm.slane %v488, 0
    %v492 = vsel %vm427, %v449, 0
    %494 = vmatpush.bf16.msra.mxu0 0
    %495 = vmatpush.bf16.msra.mxu0 0
    %496 = vmatpush.bf16.msra.mxu0 0
    %497 = vmatpush.bf16.msra.mxu0 0
    %498 = vmatpush.bf16.msra.mxu0 0
    %499 = vmatpush.bf16.msra.mxu0 0
    %500 = vmatpush.bf16.msra.mxu0 %v484
    %501 = vmatpush.bf16.msra.mxu0 %v483
    %502 = vmatmul.bf16.gmra.mxu0 %v492
    %v503 = vpop.f32.mrf.mxu0
    %v504 = vadd.f32 %v490, %v503
    %v505 = vpop.f32.mrf.mxu0
    %506 = vdwg.mxu0
    %vm507 = vcmask 40960
    %508 = vst.msk [vmem:[#allocation27] sm:$0x1] %vm507, %v504
    %v509 = vld [vmem:[%s11] sm:$0xf]
    %v510 = vlaneseq
    %v511 = vand.u32 %v510, 127
    %512 = vset.pattern.permute.xlu0 0
    %513 = vperm.xlu0 %512, %v509
    %v514 = vpop.permute.xlu0 %513
    %vm515 = vcmp.eq.s32.totalorder %v511, %v514
    %v516 = vsel %vm515, 1, 0
    %v517 = vcvt.s32.f32 %v516
    %vm518 = vcmask 48128
    %v520 = vsel %vm518, %v517, 0
    %vm522 = vcmask 1045504
    %v524 = vsel %vm522, %v405, 0
    %526 = vmatpush.msra.mxu0 0.0
    %527 = vmatpush.msra.mxu0 0.0
    %528 = vmatpush.msra.mxu0 0.0
    %529 = vmatpush.msra.mxu0 0.0
    %530 = vmatpush.msra.mxu0 0.0
    %531 = vmatpush.msra.mxu0 0.0
    %532 = vmatpush.msra.mxu0 0.0
    %533 = vmatpush.msra.mxu0 0.0
    %534 = vmatpush.msra.mxu0 0.0
    %535 = vmatpush.msra.mxu0 0.0
    %536 = vmatpush.msra.mxu0 0.0
    %537 = vmatpush.msra.mxu0 0.0
    %538 = vmatpush.msra.mxu0 0.0
    %539 = vmatpush.msra.mxu0 0.0
    %540 = vmatpush.msra.mxu0 0.0
    %541 = vmatpush.msra.mxu0 %v524
    %542 = vmatmul.f32.gmra.mxu0 %v520
    %v543 = vpop.f32.mrf.mxu0
    %v544 = vadd.f32 0.0, %v543
    %545 = vdwg.mxu0
    %v546 = vld [vmem:[%s13] sm:$0xff]
    %v547 = vld [vmem:[%s13 + $0x8] sm:$0xf]
    %v548 = vld [vmem:[%s3] sm:$0xff]
    %v549 = vld [vmem:[%s3 + $0x8] sm:$0x7f]
    %550 = vset.pattern.permute.xlu0 0
    %551 = vperm.xlu0 %550, %v546
    %v552 = vpop.permute.xlu0 %551
    %553 = vset.pattern.permute.xlu0 0
    %554 = vperm.xlu0 %553, %v547
    %v555 = vpop.permute.xlu0 %554
    %vm556 = vcmp.eq.s32.totalorder %v511, %v552
    %vm557 = vcmp.eq.s32.totalorder %v511, %v555
    %v558 = vsel %vm556, 1, 0
    %v559 = vsel %vm557, 1, 0
    %v560 = vcvt.s32.f32 %v558
    %v561 = vcvt.s32.f32 %v559
    %vm562 = vcmask 121856
    %v564 = vsel %vm562, %v560, 0
    %v567 = vsel %vm562, %v561, 0
    %vm569 = vcmask 1046528
    %v571 = vsel %vm569, %v549, 0
    %573 = vmatpush.msra.mxu0 0.0
    %574 = vmatpush.msra.mxu0 0.0
    %575 = vmatpush.msra.mxu0 0.0
    %576 = vmatpush.msra.mxu0 0.0
    %577 = vmatpush.msra.mxu0 0.0
    %578 = vmatpush.msra.mxu0 0.0
    %579 = vmatpush.msra.mxu0 0.0
    %580 = vmatpush.msra.mxu0 0.0
    %581 = vmatpush.msra.mxu0 0.0
    %582 = vmatpush.msra.mxu0 0.0
    %583 = vmatpush.msra.mxu0 0.0
    %584 = vmatpush.msra.mxu0 0.0
    %585 = vmatpush.msra.mxu0 0.0
    %586 = vmatpush.msra.mxu0 0.0
    %587 = vmatpush.msra.mxu0 %v571
    %588 = vmatpush.msra.mxu0 %v548
    %589 = vmatmul.f32.gmra.mxu0 %v564
    %v590 = vpop.f32.mrf.mxu0
    %v591 = vadd.f32 0.0, %v590
    %592 = vmatmul.f32.gmra.mxu0 %v567
    %v593 = vpop.f32.mrf.mxu0
    %v594 = vadd.f32 0.0, %v593
    %595 = vdwg.mxu0
    %v596 = vld [vmem:[%s19] sm:$0xf]
    %v597 = vld [vmem:[%s5] sm:$0xff]
    %v598 = vld [vmem:[%s5 + $0x8] sm:$0xff]
    %v599 = vld [vmem:[%s5 + $0x10] sm:$0xf]
    %600 = vset.pattern.permute.xlu0 0
    %601 = vperm.xlu0 %600, %v596
    %v602 = vpop.permute.xlu0 %601
    %vm603 = vcmp.eq.s32.totalorder %v511, %v602
    %v604 = vsel %vm603, 1, 0
    %v605 = vcvt.s32.f32 %v604
    %vm606 = vcmask 162816
    %v608 = vsel %vm606, %v605, 0
    %vm610 = vcmask 1043456
    %v612 = vsel %vm610, %v599, 0
    %614 = vmatpush.msra.mxu0 0.0
    %615 = vmatpush.msra.mxu0 0.0
    %616 = vmatpush.msra.mxu0 0.0
    %617 = vmatpush.msra.mxu0 0.0
    %618 = vmatpush.msra.mxu0 0.0
    %619 = vmatpush.msra.mxu0 0.0
    %620 = vmatpush.msra.mxu0 0.0
    %621 = vmatpush.msra.mxu0 0.0
    %622 = vmatpush.msra.mxu0 0.0
    %623 = vmatpush.msra.mxu0 0.0
    %624 = vmatpush.msra.mxu0 0.0
    %625 = vmatpush.msra.mxu0 0.0
    %626 = vmatpush.msra.mxu0 0.0
    %627 = vmatpush.msra.mxu0 %v612
    %628 = vmatpush.msra.mxu0 %v598
    %629 = vmatpush.msra.mxu0 %v597
    %630 = vmatmul.f32.gmra.mxu0 %v608
    %v631 = vpop.f32.mrf.mxu0
    %v632 = vadd.f32 0.0, %v631
    %633 = vdwg.mxu0
    %v634 = vld [vmem:[#allocation6] sm:$0xff]
    %v635 = vld [vmem:[#allocation6 + $0x8] sm:$0x3]
    %v636 = vld [vmem:[%s21] sm:$0xf]
    %637 = vset.pattern.permute.xlu0 0
    %638 = vperm.xlu0 %637, %v636
    %v639 = vpop.permute.xlu0 %638
    %vm640 = vcmp.eq.s32.totalorder %v511, %v639
    %v641 = vsel %vm640, 1, 0
    %v642 = vcvt.s32.f32 %v641
    %vm643 = vcmask 80896
    %v645 = vsel %vm643, %v642, 0
    %vm647 = vcmask 1041408
    %v649 = vsel %vm647, %v635, 0
    %651 = vmatpush.msra.mxu0 0.0
    %652 = vmatpush.msra.mxu0 0.0
    %653 = vmatpush.msra.mxu0 0.0
    %654 = vmatpush.msra.mxu0 0.0
    %655 = vmatpush.msra.mxu0 0.0
    %656 = vmatpush.msra.mxu0 0.0
    %657 = vmatpush.msra.mxu0 0.0
    %658 = vmatpush.msra.mxu0 0.0
    %659 = vmatpush.msra.mxu0 0.0
    %660 = vmatpush.msra.mxu0 0.0
    %661 = vmatpush.msra.mxu0 0.0
    %662 = vmatpush.msra.mxu0 0.0
    %663 = vmatpush.msra.mxu0 0.0
    %664 = vmatpush.msra.mxu0 0.0
    %665 = vmatpush.msra.mxu0 %v649
    %666 = vmatpush.msra.mxu0 %v634
    %667 = vmatmul.f32.gmra.mxu0 %v645
    %v668 = vpop.f32.mrf.mxu0
    %v669 = vadd.f32 0.0, %v668
    %670 = vdwg.mxu0
    %v671 = vld [vmem:[%s23] sm:$0xff]
    %v672 = vld [vmem:[%s23 + $0x8] sm:$0x7]
    %v673 = vld [vmem:[%s9] sm:$0xff]
    %v674 = vld [vmem:[%s9 + $0x8] sm:$0xff]
    %v675 = vld [vmem:[%s9 + $0x10] sm:$0xff]
    %v676 = vld [vmem:[%s9 + $0x18] sm:$0x1]
    %677 = vset.pattern.permute.xlu0 0
    %678 = vperm.xlu0 %677, %v671
    %v679 = vpop.permute.xlu0 %678
    %680 = vset.pattern.permute.xlu0 0
    %681 = vperm.xlu0 %680, %v672
    %v682 = vpop.permute.xlu0 %681
    %vm683 = vcmp.eq.s32.totalorder %v511, %v679
    %vm684 = vcmp.eq.s32.totalorder %v511, %v682
    %v685 = vsel %vm683, 1, 0
    %v686 = vsel %vm684, 1, 0
    %v687 = vcvt.s32.f32 %v685
    %v688 = vcvt.s32.f32 %v686
    %vm689 = vcmask 203776
    %v691 = vsel %vm689, %v687, 0
    %v694 = vsel %vm689, %v688, 0
    %vm696 = vcmask 1040384
    %v698 = vsel %vm696, %v676, 0
    %700 = vmatpush.msra.mxu0 0.0
    %701 = vmatpush.msra.mxu0 0.0
    %702 = vmatpush.msra.mxu0 0.0
    %703 = vmatpush.msra.mxu0 0.0
    %704 = vmatpush.msra.mxu0 0.0
    %705 = vmatpush.msra.mxu0 0.0
    %706 = vmatpush.msra.mxu0 0.0
    %707 = vmatpush.msra.mxu0 0.0
    %708 = vmatpush.msra.mxu0 0.0
    %709 = vmatpush.msra.mxu0 0.0
    %710 = vmatpush.msra.mxu0 0.0
    %711 = vmatpush.msra.mxu0 0.0
    %712 = vmatpush.msra.mxu0 %v698
    %713 = vmatpush.msra.mxu0 %v675
    %714 = vmatpush.msra.mxu0 %v674
    %715 = vmatpush.msra.mxu0 %v673
    %716 = vmatmul.f32.gmra.mxu0 %v691
    %v717 = vpop.f32.mrf.mxu0
    %v718 = vadd.f32 0.0, %v717
    %719 = vmatmul.f32.gmra.mxu0 %v694
    %v720 = vpop.f32.mrf.mxu0
    %v721 = vadd.f32 0.0, %v720
    %722 = vdwg.mxu0
    %v723 = vpack.c.bf16 %v544, %v544
    %v724 = vld [vmem:[#allocation9] sm:$0xf]
    %v725 = vld [vmem:[#allocation9 + $0x4] sm:$0xf]
    %v726 = vld [vmem:[#allocation9 + $0x8] sm:$0xf]
    %v727 = vld [vmem:[#allocation9 + $0xc] sm:$0xf]
    %v732 = vunpack.c.l.b16 %v724
    %v733 = vunpack.c.l.b16 %v725
    %v734 = vunpack.c.l.b16 %v726
    %v735 = vunpack.c.l.b16 %v727
    %v736 = vpack.c.b16 %v733, %v732
    %v737 = vpack.c.b16 %v735, %v734
    %v741 = vsel %vm427, %v723, 0
    %743 = vmatpush.bf16.msra.mxu0 0
    %744 = vmatpush.bf16.msra.mxu0 0
    %745 = vmatpush.bf16.msra.mxu0 0
    %746 = vmatpush.bf16.msra.mxu0 0
    %747 = vmatpush.bf16.msra.mxu0 0
    %748 = vmatpush.bf16.msra.mxu0 0
    %749 = vmatpush.bf16.msra.mxu0 %v737
    %750 = vmatpush.bf16.msra.mxu0 %v736
    %751 = vmatmul.bf16.gmra.mxu0 %v741
    %v752 = vpop.f32.mrf.mxu0
    %v753 = vadd.f32 0.0, %v752
    %v754 = vpop.f32.mrf.mxu0
    %755 = vdwg.mxu0
    %v756 = vld [vmem:[%s15] sm:$0xff]
    %v757 = vld [vmem:[%s15 + $0x8] sm:$0xf]
    %758 = vset.pattern.permute.xlu0 0
    %759 = vperm.xlu0 %758, %v756
    %v760 = vpop.permute.xlu0 %759
    %761 = vset.pattern.permute.xlu0 0
    %762 = vperm.xlu0 %761, %v757
    %v763 = vpop.permute.xlu0 %762
    %vm764 = vcmp.eq.s32.totalorder %v511, %v760
    %vm765 = vcmp.eq.s32.totalorder %v511, %v763
    %v766 = vsel %vm764, 1, 0
    %v767 = vsel %vm765, 1, 0
    %v768 = vcvt.s32.f32 %v766
    %v769 = vcvt.s32.f32 %v767
    %v770 = vpack.c.bf16 %v594, %v591
    %v771 = vld [vmem:[#allocation11] sm:$0xf]
    %v772 = vld [vmem:[#allocation11 + $0x4] sm:$0xf]
    %v773 = vld [vmem:[#allocation11 + $0x8] sm:$0xf]
    %v774 = vld [vmem:[#allocation11 + $0xc] sm:$0xf]
    %v779 = vunpack.c.l.b16 %v771
    %v780 = vunpack.c.l.b16 %v772
    %v781 = vunpack.c.l.b16 %v773
    %v782 = vunpack.c.l.b16 %v774
    %v783 = vpack.c.b16 %v780, %v779
    %v784 = vpack.c.b16 %v782, %v781
    %v788 = vsel %vm427, %v770, 0
    %790 = vmatpush.bf16.msra.mxu0 0
    %791 = vmatpush.bf16.msra.mxu0 0
    %792 = vmatpush.bf16.msra.mxu0 0
    %793 = vmatpush.bf16.msra.mxu0 0
    %794 = vmatpush.bf16.msra.mxu0 0
    %795 = vmatpush.bf16.msra.mxu0 0
    %796 = vmatpush.bf16.msra.mxu0 %v784
    %797 = vmatpush.bf16.msra.mxu0 %v783
    %798 = vmatmul.bf16.gmra.mxu0 %v788
    %v799 = vpop.f32.mrf.mxu0
    %v800 = vadd.f32 0.0, %v799
    %v801 = vpop.f32.mrf.mxu0
    %v802 = vadd.f32 0.0, %v801
    %803 = vdwg.mxu0
    %vm804 = vcmask 31744
    %v806 = vsel %vm804, %v768, 0
    %v809 = vsel %vm804, %v769, 0
    %v812 = vsel %vm610, %v753, 0
    %814 = vmatpush.msra.mxu0 0.0
    %815 = vmatpush.msra.mxu0 0.0
    %816 = vmatpush.msra.mxu0 0.0
    %817 = vmatpush.msra.mxu0 0.0
    %818 = vmatpush.msra.mxu0 0.0
    %819 = vmatpush.msra.mxu0 0.0
    %820 = vmatpush.msra.mxu0 0.0
    %821 = vmatpush.msra.mxu0 0.0
    %822 = vmatpush.msra.mxu0 0.0
    %823 = vmatpush.msra.mxu0 0.0
    %824 = vmatpush.msra.mxu0 0.0
    %825 = vmatpush.msra.mxu0 0.0
    %826 = vmatpush.msra.mxu0 0.0
    %827 = vmatpush.msra.mxu0 0.0
    %828 = vmatpush.msra.mxu0 0.0
    %829 = vmatpush.msra.mxu0 %v812
    %830 = vmatmul.f32.gmra.mxu0 %v806
    %v831 = vpop.f32.mrf.mxu0
    %v832 = vadd.f32 %v800, %v831
    %833 = vmatmul.f32.gmra.mxu0 %v809
    %v834 = vpop.f32.mrf.mxu0
    %v835 = vadd.f32 %v802, %v834
    %836 = vdwg.mxu0
    %v837 = vld [vmem:[%s43] sm:$0x1]
    %v839 = vperm.slane %v837, 0
    %v841 = vadd.f32 %v832, %v839
    %v842 = vadd.f32 %v835, %v839
    %v843 = vmul.f32 %v841, 0.5
    %v844 = vmul.f32 %v842, 0.5
    %v845 = vtanh.pop %v843
    %v846 = vtanh.pop %v844
    %v847 = vadd.f32 %v845, 1.0
    %v848 = vadd.f32 %v846, 1.0
    %v849 = vmul.f32 %v847, 0.5
    %v850 = vmul.f32 %v848, 0.5
    %v851 = vmul.f32 %v841, %v849
    %v852 = vmul.f32 %v842, %v850
    %v853 = vld [vmem:[%s45] sm:$0x1]
    %v854 = vld [vmem:[#allocation3] sm:$0x1]
    %855 = vxpose.xlu0.b32.start [1/16] %v851, 128
    %856 = vxpose.xlu0.b32.cont [2/16] %v852, 128
    %857 = vxpose.xlu0.b32.cont [3/16] 0.0, 128
    %858 = vxpose.xlu0.b32.cont [4/16] 0.0, 128
    %859 = vxpose.xlu0.b32.cont [5/16] 0.0, 128
    %860 = vxpose.xlu0.b32.cont [6/16] 0.0, 128
    %861 = vxpose.xlu0.b32.cont [7/16] 0.0, 128
    %862 = vxpose.xlu0.b32.cont [8/16] 0.0, 128
    %863 = vxpose.xlu0.b32.cont [9/16] 0.0, 128
    %864 = vxpose.xlu0.b32.cont [10/16] 0.0, 128
    %865 = vxpose.xlu0.b32.cont [11/16] 0.0, 128
    %866 = vxpose.xlu0.b32.cont [12/16] 0.0, 128
    %867 = vxpose.xlu0.b32.cont [13/16] 0.0, 128
    %868 = vxpose.xlu0.b32.cont [14/16] 0.0, 128
    %869 = vxpose.xlu0.b32.cont [15/16] 0.0, 128
    %870 = vxpose.xlu0.b32.end [16/16] 0.0, 128
    %v871 = vpop.trf.xlu0
    %v872 = vpop.trf.xlu0
    %v873 = vpop.trf.xlu0
    %v874 = vpop.trf.xlu0
    %v875 = vpop.trf.xlu0
    %v876 = vpop.trf.xlu0
    %v877 = vpop.trf.xlu0
    %v878 = vpop.trf.xlu0
    %v879 = vpop.trf.xlu0
    %v880 = vpop.trf.xlu0
    %v881 = vpop.trf.xlu0
    %v882 = vpop.trf.xlu0
    %v883 = vpop.trf.xlu0
    %v884 = vpop.trf.xlu0
    %v885 = vpop.trf.xlu0
    %v886 = vpop.trf.xlu0
    %v887 = vpack.c.bf16 %v872, %v871
    %v888 = vpack.c.bf16 %v874, %v873
    %890 = vset.pattern.permute.xlu0 0
    %891 = vperm.xlu0 %890, %v854
    %v892 = vpop.permute.xlu0 %891
    %v894 = vperm.slane %v892, 0
    %v896 = vsel %vm427, %v853, 0
    %898 = vmatpush.bf16.msra.mxu0 0
    %899 = vmatpush.bf16.msra.mxu0 0
    %900 = vmatpush.bf16.msra.mxu0 0
    %901 = vmatpush.bf16.msra.mxu0 0
    %902 = vmatpush.bf16.msra.mxu0 0
    %903 = vmatpush.bf16.msra.mxu0 0
    %904 = vmatpush.bf16.msra.mxu0 %v888
    %905 = vmatpush.bf16.msra.mxu0 %v887
    %906 = vmatmul.bf16.gmra.mxu0 %v896
    %v907 = vpop.f32.mrf.mxu0
    %v908 = vadd.f32 %v894, %v907
    %v909 = vpop.f32.mrf.mxu0
    %910 = vdwg.mxu0
    %v911 = vld [vmem:[%s17] sm:$0x1]
    %v912 = vlaneseq
    %v913 = vshrl.u32 %v912, 7
    %v914 = vperm.slane %v911, 0
    %vm915 = vcmp.eq.s32.totalorder %v913, %v914
    %v916 = vsel %vm915, 1, 0
    %v917 = vcvt.s32.f32 %v916
    %v918 = vperm.slane %v908, 0
    %v919 = vsel %vm915, %v918, -1e+30
    %vm920 = vcmask 93184
    %v921 = vsel %vm920, %v919, -inf
    %922 = vmax.xlane.f32.xlu0 %v921
    %v923 = vpop.xlane.xlu0 %922
    %v924 = vmul.f32 %v917, %v923
    %v925 = vsel %vm920, %v924, 0.0
    %v926 = vrot.slane %v925, 4
    %v927 = vadd.f32 %v925, %v926
    %v928 = vrot.slane %v927, 2
    %v929 = vadd.f32 %v927, %v928
    %v930 = vrot.slane %v929, 1
    %v931 = vadd.f32 %v929, %v930
    %v932 = vsub.f32 %v908, %v931
    %v933 = vmul.f32 %v932, 1.442695
    %v934 = vpow.pop %v933
    %v935 = vperm.slane %v934, 0
    %v936 = vmul.f32 %v917, %v935
    %v937 = vsel %vm920, %v936, 0.0
    %938 = vadd.xlane.f32.xlu0 %v937
    %v939 = vpop.xlane.xlu0 %938
    %v940 = vmul.f32 %v917, %v939
    %v941 = vsel %vm920, %v940, 0.0
    %v942 = vrot.slane %v941, 4
    %v943 = vadd.f32 %v941, %v942
    %v944 = vrot.slane %v943, 2
    %v945 = vadd.f32 %v943, %v944
    %v946 = vrot.slane %v945, 1
    %v947 = vadd.f32 %v945, %v946
    %v948 = vrcp.pop %v947
    %v949 = vmul.f32 %v947, %v948
    %v950 = vsub.f32 1.0, %v949
    %v951 = vmul.f32 %v948, %v950
    %v952 = vadd.f32 %v948, %v951
    %vm953 = vweird.f32 %v947
    %vm954 = vweird.f32 %v948
    %vm955 = vmor %vm953, %vm954
    %v956 = vsel %vm955, %v948, %v952
    %v957 = vand.u32 2147483647, %v947
    %vm958 = vcmp.eq.f32.partialorder %v957, 8.507059e+37
    %v959 = vand.u32 %v947, 2147483648
    %v960 = vor.u32 1.1754944e-38, %v959
    %v961 = vsel %vm958, %v960, %v956
    %v962 = vmul.f32 %v934, %v961
    %vm963 = vcmask 90112
    %964 = vst.msk [vmem:[#allocation30] sm:$0x1] %vm963, %v962
    %v965 = vld [vmem:[#allocation12] sm:$0xf]
    %v966 = vld [vmem:[#allocation12 + $0x4] sm:$0xf]
    %v967 = vld [vmem:[#allocation12 + $0x8] sm:$0xf]
    %v968 = vld [vmem:[#allocation12 + $0xc] sm:$0xf]
    %v969 = vpack.c.bf16 %v632, %v632
    %v970 = vld [vmem:[#allocation14] sm:$0xf]
    %v971 = vld [vmem:[#allocation14 + $0x4] sm:$0xf]
    %v972 = vld [vmem:[#allocation14 + $0x8] sm:$0xf]
    %v973 = vld [vmem:[#allocation14 + $0xc] sm:$0xf]
    %v978 = vunpack.c.l.b16 %v970
    %v979 = vunpack.c.l.b16 %v971
    %v980 = vunpack.c.l.b16 %v972
    %v981 = vunpack.c.l.b16 %v973
    %v982 = vpack.c.b16 %v979, %v978
    %v983 = vpack.c.b16 %v981, %v980
    %v987 = vsel %vm427, %v969, 0
    %989 = vmatpush.bf16.msra.mxu0 0
    %990 = vmatpush.bf16.msra.mxu0 0
    %991 = vmatpush.bf16.msra.mxu0 0
    %992 = vmatpush.bf16.msra.mxu0 0
    %993 = vmatpush.bf16.msra.mxu0 0
    %994 = vmatpush.bf16.msra.mxu0 0
    %995 = vmatpush.bf16.msra.mxu0 %v983
    %996 = vmatpush.bf16.msra.mxu0 %v982
    %997 = vmatmul.bf16.gmra.mxu0 %v987
    %v998 = vpop.f32.mrf.mxu0
    %v999 = vadd.f32 0.0, %v998
    %v1000 = vpop.f32.mrf.mxu0
    %1001 = vdwg.mxu0
    %v1006 = vunpack.c.l.b16 %v965
    %v1007 = vunpack.c.l.b16 %v966
    %v1008 = vunpack.c.l.b16 %v967
    %v1009 = vunpack.c.l.b16 %v968
    %v1010 = vpack.c.b16 %v1007, %v1006
    %v1011 = vpack.c.b16 %v1009, %v1008
    %1014 = vmatpush.bf16.msra.mxu0 0
    %1015 = vmatpush.bf16.msra.mxu0 0
    %1016 = vmatpush.bf16.msra.mxu0 0
    %1017 = vmatpush.bf16.msra.mxu0 0
    %1018 = vmatpush.bf16.msra.mxu0 0
    %1019 = vmatpush.bf16.msra.mxu0 0
    %1020 = vmatpush.bf16.msra.mxu0 %v1011
    %1021 = vmatpush.bf16.msra.mxu0 %v1010
    %1022 = vmatmul.bf16.gmra.mxu0 %v741
    %v1023 = vpop.f32.mrf.mxu0
    %v1024 = vadd.f32 %v999, %v1023
    %v1025 = vpop.f32.mrf.mxu0
    %1026 = vdwg.mxu0
    %v1027 = vpack.c.bf16 %v635, %v634
    %v1028 = vld [vmem:[#allocation15] sm:$0xf]
    %v1029 = vld [vmem:[#allocation15 + $0x4] sm:$0xf]
    %v1030 = vld [vmem:[#allocation15 + $0x8] sm:$0xf]
    %v1031 = vld [vmem:[#allocation15 + $0xc] sm:$0xf]
    %v1032 = vld [vmem:[%s55] sm:$0x1]
    %v1034 = vperm.slane %v1032, 0
    %v1040 = vunpack.c.l.b16 %v1028
    %v1041 = vunpack.c.l.b16 %v1029
    %v1042 = vunpack.c.l.b16 %v1030
    %v1043 = vunpack.c.l.b16 %v1031
    %v1044 = vpack.c.b16 %v1041, %v1040
    %v1045 = vpack.c.b16 %v1043, %v1042
    %v1049 = vsel %vm427, %v1027, 0
    %1051 = vmatpush.bf16.msra.mxu0 0
    %1052 = vmatpush.bf16.msra.mxu0 0
    %1053 = vmatpush.bf16.msra.mxu0 0
    %1054 = vmatpush.bf16.msra.mxu0 0
    %1055 = vmatpush.bf16.msra.mxu0 0
    %1056 = vmatpush.bf16.msra.mxu0 0
    %1057 = vmatpush.bf16.msra.mxu0 %v1045
    %1058 = vmatpush.bf16.msra.mxu0 %v1044
    %1059 = vmatmul.bf16.gmra.mxu0 %v1049
    %v1060 = vpop.f32.mrf.mxu0
    %v1061 = vadd.f32 %v1034, %v1060
    %v1062 = vpop.f32.mrf.mxu0
    %v1063 = vadd.f32 %v1034, %v1062
    %1064 = vdwg.mxu0
    %v1065 = vld [vmem:[%s57] sm:$0x1]
    %v1066 = vld [vmem:[#allocation4] sm:$0x1]
    %v1067 = vperm.slane %v1024, 0
    %v1068 = vadd.f32 %v1061, %v1067
    %v1069 = vadd.f32 %v1063, %v1067
    %v1070 = vmul.f32 %v1068, 0.5
    %v1071 = vmul.f32 %v1069, 0.5
    %v1072 = vtanh.pop %v1070
    %v1073 = vtanh.pop %v1071
    %v1074 = vadd.f32 %v1072, 1.0
    %v1075 = vadd.f32 %v1073, 1.0
    %v1076 = vmul.f32 %v1074, 0.5
    %v1077 = vmul.f32 %v1075, 0.5
    %v1078 = vmul.f32 %v1068, %v1076
    %v1079 = vmul.f32 %v1069, %v1077
    %1080 = vxpose.xlu0.b32.start [1/16] %v1078, 128
    %1081 = vxpose.xlu0.b32.cont [2/16] %v1079, 128
    %1082 = vxpose.xlu0.b32.cont [3/16] 0.0, 128
    %1083 = vxpose.xlu0.b32.cont [4/16] 0.0, 128
    %1084 = vxpose.xlu0.b32.cont [5/16] 0.0, 128
    %1085 = vxpose.xlu0.b32.cont [6/16] 0.0, 128
    %1086 = vxpose.xlu0.b32.cont [7/16] 0.0, 128
    %1087 = vxpose.xlu0.b32.cont [8/16] 0.0, 128
    %1088 = vxpose.xlu0.b32.cont [9/16] 0.0, 128
    %1089 = vxpose.xlu0.b32.cont [10/16] 0.0, 128
    %1090 = vxpose.xlu0.b32.cont [11/16] 0.0, 128
    %1091 = vxpose.xlu0.b32.cont [12/16] 0.0, 128
    %1092 = vxpose.xlu0.b32.cont [13/16] 0.0, 128
    %1093 = vxpose.xlu0.b32.cont [14/16] 0.0, 128
    %1094 = vxpose.xlu0.b32.cont [15/16] 0.0, 128
    %1095 = vxpose.xlu0.b32.end [16/16] 0.0, 128
    %v1096 = vpop.trf.xlu0
    %v1097 = vpop.trf.xlu0
    %v1098 = vpop.trf.xlu0
    %v1099 = vpop.trf.xlu0
    %v1100 = vpop.trf.xlu0
    %v1101 = vpop.trf.xlu0
    %v1102 = vpop.trf.xlu0
    %v1103 = vpop.trf.xlu0
    %v1104 = vpop.trf.xlu0
    %v1105 = vpop.trf.xlu0
    %v1106 = vpop.trf.xlu0
    %v1107 = vpop.trf.xlu0
    %v1108 = vpop.trf.xlu0
    %v1109 = vpop.trf.xlu0
    %v1110 = vpop.trf.xlu0
    %v1111 = vpop.trf.xlu0
    %v1112 = vpack.c.bf16 %v1097, %v1096
    %v1113 = vpack.c.bf16 %v1099, %v1098
    %1115 = vset.pattern.permute.xlu0 0
    %1116 = vperm.xlu0 %1115, %v1066
    %v1117 = vpop.permute.xlu0 %1116
    %v1119 = vperm.slane %v1117, 0
    %v1121 = vsel %vm427, %v1065, 0
    %1123 = vmatpush.bf16.msra.mxu0 0
    %1124 = vmatpush.bf16.msra.mxu0 0
    %1125 = vmatpush.bf16.msra.mxu0 0
    %1126 = vmatpush.bf16.msra.mxu0 0
    %1127 = vmatpush.bf16.msra.mxu0 0
    %1128 = vmatpush.bf16.msra.mxu0 0
    %1129 = vmatpush.bf16.msra.mxu0 %v1113
    %1130 = vmatpush.bf16.msra.mxu0 %v1112
    %1131 = vmatmul.bf16.gmra.mxu0 %v1121
    %v1132 = vpop.f32.mrf.mxu0
    %v1133 = vadd.f32 %v1119, %v1132
    %v1134 = vpop.f32.mrf.mxu0
    %1135 = vdwg.mxu0
    %vm1136 = vcmask 73728
    %1137 = vst.msk [vmem:[#allocation28] sm:$0x1] %vm1136, %v1133
    %v1138 = vperm.slane %v1024, 1
    %v1139 = vadd.f32 %v1061, %v1138
    %v1140 = vadd.f32 %v1063, %v1138
    %v1141 = vmul.f32 %v1139, 0.5
    %v1142 = vmul.f32 %v1140, 0.5
    %v1143 = vtanh.pop %v1141
    %v1144 = vtanh.pop %v1142
    %v1145 = vadd.f32 %v1143, 1.0
    %v1146 = vadd.f32 %v1144, 1.0
    %v1147 = vmul.f32 %v1145, 0.5
    %v1148 = vmul.f32 %v1146, 0.5
    %v1149 = vmul.f32 %v1139, %v1147
    %v1150 = vmul.f32 %v1140, %v1148
    %1151 = vxpose.xlu0.b32.start [1/16] %v1149, 128
    %1152 = vxpose.xlu0.b32.cont [2/16] %v1150, 128
    %1153 = vxpose.xlu0.b32.cont [3/16] 0.0, 128
    %1154 = vxpose.xlu0.b32.cont [4/16] 0.0, 128
    %1155 = vxpose.xlu0.b32.cont [5/16] 0.0, 128
    %1156 = vxpose.xlu0.b32.cont [6/16] 0.0, 128
    %1157 = vxpose.xlu0.b32.cont [7/16] 0.0, 128
    %1158 = vxpose.xlu0.b32.cont [8/16] 0.0, 128
    %1159 = vxpose.xlu0.b32.cont [9/16] 0.0, 128
    %1160 = vxpose.xlu0.b32.cont [10/16] 0.0, 128
    %1161 = vxpose.xlu0.b32.cont [11/16] 0.0, 128
    %1162 = vxpose.xlu0.b32.cont [12/16] 0.0, 128
    %1163 = vxpose.xlu0.b32.cont [13/16] 0.0, 128
    %1164 = vxpose.xlu0.b32.cont [14/16] 0.0, 128
    %1165 = vxpose.xlu0.b32.cont [15/16] 0.0, 128
    %1166 = vxpose.xlu0.b32.end [16/16] 0.0, 128
    %v1167 = vpop.trf.xlu0
    %v1168 = vpop.trf.xlu0
    %v1169 = vpop.trf.xlu0
    %v1170 = vpop.trf.xlu0
    %v1171 = vpop.trf.xlu0
    %v1172 = vpop.trf.xlu0
    %v1173 = vpop.trf.xlu0
    %v1174 = vpop.trf.xlu0
    %v1175 = vpop.trf.xlu0
    %v1176 = vpop.trf.xlu0
    %v1177 = vpop.trf.xlu0
    %v1178 = vpop.trf.xlu0
    %v1179 = vpop.trf.xlu0
    %v1180 = vpop.trf.xlu0
    %v1181 = vpop.trf.xlu0
    %v1182 = vpop.trf.xlu0
    %v1183 = vpack.c.bf16 %v1168, %v1167
    %v1184 = vpack.c.bf16 %v1170, %v1169
    %1185 = vmatpush.bf16.msra.mxu0 0
    %1186 = vmatpush.bf16.msra.mxu0 0
    %1187 = vmatpush.bf16.msra.mxu0 0
    %1188 = vmatpush.bf16.msra.mxu0 0
    %1189 = vmatpush.bf16.msra.mxu0 0
    %1190 = vmatpush.bf16.msra.mxu0 0
    %1191 = vmatpush.bf16.msra.mxu0 %v1184
    %1192 = vmatpush.bf16.msra.mxu0 %v1183
    %1193 = vmatmul.bf16.gmra.mxu0 %v1121
    %v1194 = vpop.f32.mrf.mxu0
    %v1195 = vadd.f32 %v1119, %v1194
    %v1196 = vpop.f32.mrf.mxu0
    %1197 = vdwg.mxu0
    %1198 = vst.msk [vmem:[#allocation28 + $0x1] sm:$0x1] %vm1136, %v1195
    %v1199 = vperm.slane %v1024, 2
    %v1200 = vadd.f32 %v1061, %v1199
    %v1201 = vadd.f32 %v1063, %v1199
    %v1202 = vmul.f32 %v1200, 0.5
    %v1203 = vmul.f32 %v1201, 0.5
    %v1204 = vtanh.pop %v1202
    %v1205 = vtanh.pop %v1203
    %v1206 = vadd.f32 %v1204, 1.0
    %v1207 = vadd.f32 %v1205, 1.0
    %v1208 = vmul.f32 %v1206, 0.5
    %v1209 = vmul.f32 %v1207, 0.5
    %v1210 = vmul.f32 %v1200, %v1208
    %v1211 = vmul.f32 %v1201, %v1209
    %1212 = vxpose.xlu0.b32.start [1/16] %v1210, 128
    %1213 = vxpose.xlu0.b32.cont [2/16] %v1211, 128
    %1214 = vxpose.xlu0.b32.cont [3/16] 0.0, 128
    %1215 = vxpose.xlu0.b32.cont [4/16] 0.0, 128
    %1216 = vxpose.xlu0.b32.cont [5/16] 0.0, 128
    %1217 = vxpose.xlu0.b32.cont [6/16] 0.0, 128
    %1218 = vxpose.xlu0.b32.cont [7/16] 0.0, 128
    %1219 = vxpose.xlu0.b32.cont [8/16] 0.0, 128
    %1220 = vxpose.xlu0.b32.cont [9/16] 0.0, 128
    %1221 = vxpose.xlu0.b32.cont [10/16] 0.0, 128
    %1222 = vxpose.xlu0.b32.cont [11/16] 0.0, 128
    %1223 = vxpose.xlu0.b32.cont [12/16] 0.0, 128
    %1224 = vxpose.xlu0.b32.cont [13/16] 0.0, 128
    %1225 = vxpose.xlu0.b32.cont [14/16] 0.0, 128
    %1226 = vxpose.xlu0.b32.cont [15/16] 0.0, 128
    %1227 = vxpose.xlu0.b32.end [16/16] 0.0, 128
    %v1228 = vpop.trf.xlu0
    %v1229 = vpop.trf.xlu0
    %v1230 = vpop.trf.xlu0
    %v1231 = vpop.trf.xlu0
    %v1232 = vpop.trf.xlu0
    %v1233 = vpop.trf.xlu0
    %v1234 = vpop.trf.xlu0
    %v1235 = vpop.trf.xlu0
    %v1236 = vpop.trf.xlu0
    %v1237 = vpop.trf.xlu0
    %v1238 = vpop.trf.xlu0
    %v1239 = vpop.trf.xlu0
    %v1240 = vpop.trf.xlu0
    %v1241 = vpop.trf.xlu0
    %v1242 = vpop.trf.xlu0
    %v1243 = vpop.trf.xlu0
    %v1244 = vpack.c.bf16 %v1229, %v1228
    %v1245 = vpack.c.bf16 %v1231, %v1230
    %1246 = vmatpush.bf16.msra.mxu0 0
    %1247 = vmatpush.bf16.msra.mxu0 0
    %1248 = vmatpush.bf16.msra.mxu0 0
    %1249 = vmatpush.bf16.msra.mxu0 0
    %1250 = vmatpush.bf16.msra.mxu0 0
    %1251 = vmatpush.bf16.msra.mxu0 0
    %1252 = vmatpush.bf16.msra.mxu0 %v1245
    %1253 = vmatpush.bf16.msra.mxu0 %v1244
    %1254 = vmatmul.bf16.gmra.mxu0 %v1121
    %v1255 = vpop.f32.mrf.mxu0
    %v1256 = vadd.f32 %v1119, %v1255
    %v1257 = vpop.f32.mrf.mxu0
    %1258 = vdwg.mxu0
    %1259 = vst.msk [vmem:[#allocation28 + $0x2] sm:$0x1] %vm1136, %v1256
    %v1260 = vperm.slane %v1024, 3
    %v1261 = vadd.f32 %v1061, %v1260
    %v1262 = vadd.f32 %v1063, %v1260
    %v1263 = vmul.f32 %v1261, 0.5
    %v1264 = vmul.f32 %v1262, 0.5
    %v1265 = vtanh.pop %v1263
    %v1266 = vtanh.pop %v1264
    %v1267 = vadd.f32 %v1265, 1.0
    %v1268 = vadd.f32 %v1266, 1.0
    %v1269 = vmul.f32 %v1267, 0.5
    %v1270 = vmul.f32 %v1268, 0.5
    %v1271 = vmul.f32 %v1261, %v1269
    %v1272 = vmul.f32 %v1262, %v1270
    %1273 = vxpose.xlu0.b32.start [1/16] %v1271, 128
    %1274 = vxpose.xlu0.b32.cont [2/16] %v1272, 128
    %1275 = vxpose.xlu0.b32.cont [3/16] 0.0, 128
    %1276 = vxpose.xlu0.b32.cont [4/16] 0.0, 128
    %1277 = vxpose.xlu0.b32.cont [5/16] 0.0, 128
    %1278 = vxpose.xlu0.b32.cont [6/16] 0.0, 128
    %1279 = vxpose.xlu0.b32.cont [7/16] 0.0, 128
    %1280 = vxpose.xlu0.b32.cont [8/16] 0.0, 128
    %1281 = vxpose.xlu0.b32.cont [9/16] 0.0, 128
    %1282 = vxpose.xlu0.b32.cont [10/16] 0.0, 128
    %1283 = vxpose.xlu0.b32.cont [11/16] 0.0, 128
    %1284 = vxpose.xlu0.b32.cont [12/16] 0.0, 128
    %1285 = vxpose.xlu0.b32.cont [13/16] 0.0, 128
    %1286 = vxpose.xlu0.b32.cont [14/16] 0.0, 128
    %1287 = vxpose.xlu0.b32.cont [15/16] 0.0, 128
    %1288 = vxpose.xlu0.b32.end [16/16] 0.0, 128
    %v1289 = vpop.trf.xlu0
    %v1290 = vpop.trf.xlu0
    %v1291 = vpop.trf.xlu0
    %v1292 = vpop.trf.xlu0
    %v1293 = vpop.trf.xlu0
    %v1294 = vpop.trf.xlu0
    %v1295 = vpop.trf.xlu0
    %v1296 = vpop.trf.xlu0
    %v1297 = vpop.trf.xlu0
    %v1298 = vpop.trf.xlu0
    %v1299 = vpop.trf.xlu0
    %v1300 = vpop.trf.xlu0
    %v1301 = vpop.trf.xlu0
    %v1302 = vpop.trf.xlu0
    %v1303 = vpop.trf.xlu0
    %v1304 = vpop.trf.xlu0
    %v1305 = vpack.c.bf16 %v1290, %v1289
    %v1306 = vpack.c.bf16 %v1292, %v1291
    %1307 = vmatpush.bf16.msra.mxu0 0
    %1308 = vmatpush.bf16.msra.mxu0 0
    %1309 = vmatpush.bf16.msra.mxu0 0
    %1310 = vmatpush.bf16.msra.mxu0 0
    %1311 = vmatpush.bf16.msra.mxu0 0
    %1312 = vmatpush.bf16.msra.mxu0 0
    %1313 = vmatpush.bf16.msra.mxu0 %v1306
    %1314 = vmatpush.bf16.msra.mxu0 %v1305
    %1315 = vmatmul.bf16.gmra.mxu0 %v1121
    %v1316 = vpop.f32.mrf.mxu0
    %v1317 = vadd.f32 %v1119, %v1316
    %v1318 = vpop.f32.mrf.mxu0
    %1319 = vdwg.mxu0
    %1320 = vst.msk [vmem:[#allocation28 + $0x3] sm:$0x1] %vm1136, %v1317
    %v1321 = vld [vmem:[#allocation17] sm:$0xf]
    %v1322 = vld [vmem:[#allocation17 + $0x4] sm:$0xf]
    %v1323 = vld [vmem:[#allocation17 + $0x8] sm:$0xf]
    %v1324 = vld [vmem:[#allocation17 + $0xc] sm:$0xf]
    %v1325 = vld [vmem:[%s63] sm:$0xf]
    %v1326 = vld [vmem:[%s63 + $0x4] sm:$0xf]
    %v1327 = vld [vmem:[%s63 + $0x8] sm:$0xf]
    %v1328 = vld [vmem:[%s63 + $0xc] sm:$0xf]
    %v1333 = vunpack.c.l.b16 %v1325
    %v1334 = vunpack.c.l.b16 %v1326
    %v1335 = vunpack.c.l.b16 %v1327
    %v1336 = vunpack.c.l.b16 %v1328
    %v1337 = vpack.c.b16 %v1334, %v1333
    %v1338 = vpack.c.b16 %v1336, %v1335
    %1341 = vmatpush.bf16.msra.mxu0 0
    %1342 = vmatpush.bf16.msra.mxu0 0
    %1343 = vmatpush.bf16.msra.mxu0 0
    %1344 = vmatpush.bf16.msra.mxu0 0
    %1345 = vmatpush.bf16.msra.mxu0 0
    %1346 = vmatpush.bf16.msra.mxu0 0
    %1347 = vmatpush.bf16.msra.mxu0 %v1338
    %1348 = vmatpush.bf16.msra.mxu0 %v1337
    %1349 = vmatmul.bf16.gmra.mxu0 %v987
    %v1350 = vpop.f32.mrf.mxu0
    %v1351 = vadd.f32 0.0, %v1350
    %v1352 = vpop.f32.mrf.mxu0
    %1353 = vdwg.mxu0
    %v1358 = vunpack.c.l.b16 %v1321
    %v1359 = vunpack.c.l.b16 %v1322
    %v1360 = vunpack.c.l.b16 %v1323
    %v1361 = vunpack.c.l.b16 %v1324
    %v1362 = vpack.c.b16 %v1359, %v1358
    %v1363 = vpack.c.b16 %v1361, %v1360
    %1366 = vmatpush.bf16.msra.mxu0 0
    %1367 = vmatpush.bf16.msra.mxu0 0
    %1368 = vmatpush.bf16.msra.mxu0 0
    %1369 = vmatpush.bf16.msra.mxu0 0
    %1370 = vmatpush.bf16.msra.mxu0 0
    %1371 = vmatpush.bf16.msra.mxu0 0
    %1372 = vmatpush.bf16.msra.mxu0 %v1363
    %1373 = vmatpush.bf16.msra.mxu0 %v1362
    %1374 = vmatmul.bf16.gmra.mxu0 %v741
    %v1375 = vpop.f32.mrf.mxu0
    %v1376 = vadd.f32 %v1351, %v1375
    %v1377 = vpop.f32.mrf.mxu0
    %1378 = vdwg.mxu0
    %v1379 = vpack.c.bf16 %v669, %v669
    %v1380 = vld [vmem:[#allocation18] sm:$0xf]
    %v1381 = vld [vmem:[#allocation18 + $0x4] sm:$0xf]
    %v1382 = vld [vmem:[#allocation18 + $0x8] sm:$0xf]
    %v1383 = vld [vmem:[#allocation18 + $0xc] sm:$0xf]
    %v1388 = vunpack.c.l.b16 %v1380
    %v1389 = vunpack.c.l.b16 %v1381
    %v1390 = vunpack.c.l.b16 %v1382
    %v1391 = vunpack.c.l.b16 %v1383
    %v1392 = vpack.c.b16 %v1389, %v1388
    %v1393 = vpack.c.b16 %v1391, %v1390
    %v1397 = vsel %vm427, %v1379, 0
    %1399 = vmatpush.bf16.msra.mxu0 0
    %1400 = vmatpush.bf16.msra.mxu0 0
    %1401 = vmatpush.bf16.msra.mxu0 0
    %1402 = vmatpush.bf16.msra.mxu0 0
    %1403 = vmatpush.bf16.msra.mxu0 0
    %1404 = vmatpush.bf16.msra.mxu0 0
    %1405 = vmatpush.bf16.msra.mxu0 %v1393
    %1406 = vmatpush.bf16.msra.mxu0 %v1392
    %1407 = vmatmul.bf16.gmra.mxu0 %v1397
    %v1408 = vpop.f32.mrf.mxu0
    %v1409 = vadd.f32 0.0, %v1408
    %v1410 = vpop.f32.mrf.mxu0
    %1411 = vdwg.mxu0
    %v1412 = vadd.f32 %v1376, %v1409
    %v1413 = vld [vmem:[%s25] sm:$0xff]
    %v1414 = vld [vmem:[%s25 + $0x8] sm:$0x7]
    %1415 = vset.pattern.permute.xlu0 0
    %1416 = vperm.xlu0 %1415, %v1413
    %v1417 = vpop.permute.xlu0 %1416
    %1418 = vset.pattern.permute.xlu0 0
    %1419 = vperm.xlu0 %1418, %v1414
    %v1420 = vpop.permute.xlu0 %1419
    %vm1421 = vcmp.eq.s32.totalorder %v511, %v1417
    %vm1422 = vcmp.eq.s32.totalorder %v511, %v1420
    %v1423 = vsel %vm1421, 1, 0
    %v1424 = vsel %vm1422, 1, 0
    %v1425 = vcvt.s32.f32 %v1423
    %v1426 = vcvt.s32.f32 %v1424
    %v1427 = vpack.c.bf16 %v721, %v718
    %v1428 = vld [vmem:[#allocation20] sm:$0xf]
    %v1429 = vld [vmem:[#allocation20 + $0x4] sm:$0xf]
    %v1430 = vld [vmem:[#allocation20 + $0x8] sm:$0xf]
    %v1431 = vld [vmem:[#allocation20 + $0xc] sm:$0xf]
    %v1436 = vunpack.c.l.b16 %v1428
    %v1437 = vunpack.c.l.b16 %v1429
    %v1438 = vunpack.c.l.b16 %v1430
    %v1439 = vunpack.c.l.b16 %v1431
    %v1440 = vpack.c.b16 %v1437, %v1436
    %v1441 = vpack.c.b16 %v1439, %v1438
    %v1445 = vsel %vm427, %v1427, 0
    %1447 = vmatpush.bf16.msra.mxu0 0
    %1448 = vmatpush.bf16.msra.mxu0 0
    %1449 = vmatpush.bf16.msra.mxu0 0
    %1450 = vmatpush.bf16.msra.mxu0 0
    %1451 = vmatpush.bf16.msra.mxu0 0
    %1452 = vmatpush.bf16.msra.mxu0 0
    %1453 = vmatpush.bf16.msra.mxu0 %v1441
    %1454 = vmatpush.bf16.msra.mxu0 %v1440
    %1455 = vmatmul.bf16.gmra.mxu0 %v1445
    %v1456 = vpop.f32.mrf.mxu0
    %v1457 = vadd.f32 0.0, %v1456
    %v1458 = vpop.f32.mrf.mxu0
    %v1459 = vadd.f32 0.0, %v1458
    %1460 = vdwg.mxu0
    %v1462 = vsel %vm804, %v1425, 0
    %v1465 = vsel %vm804, %v1426, 0
    %v1468 = vsel %vm610, %v1412, 0
    %1470 = vmatpush.msra.mxu0 0.0
    %1471 = vmatpush.msra.mxu0 0.0
    %1472 = vmatpush.msra.mxu0 0.0
    %1473 = vmatpush.msra.mxu0 0.0
    %1474 = vmatpush.msra.mxu0 0.0
    %1475 = vmatpush.msra.mxu0 0.0
    %1476 = vmatpush.msra.mxu0 0.0
    %1477 = vmatpush.msra.mxu0 0.0
    %1478 = vmatpush.msra.mxu0 0.0
    %1479 = vmatpush.msra.mxu0 0.0
    %1480 = vmatpush.msra.mxu0 0.0
    %1481 = vmatpush.msra.mxu0 0.0
    %1482 = vmatpush.msra.mxu0 0.0
    %1483 = vmatpush.msra.mxu0 0.0
    %1484 = vmatpush.msra.mxu0 0.0
    %1485 = vmatpush.msra.mxu0 %v1468
    %1486 = vmatmul.f32.gmra.mxu0 %v1462
    %v1487 = vpop.f32.mrf.mxu0
    %v1488 = vadd.f32 %v1457, %v1487
    %1489 = vmatmul.f32.gmra.mxu0 %v1465
    %v1490 = vpop.f32.mrf.mxu0
    %v1491 = vadd.f32 %v1459, %v1490
    %1492 = vdwg.mxu0
    %v1493 = vld [vmem:[%s69] sm:$0x1]
    %v1495 = vperm.slane %v1493, 0
    %v1497 = vadd.f32 %v1488, %v1495
    %v1498 = vadd.f32 %v1491, %v1495
    %v1499 = vmul.f32 %v1497, 0.5
    %v1500 = vmul.f32 %v1498, 0.5
    %v1501 = vtanh.pop %v1499
    %v1502 = vtanh.pop %v1500
    %v1503 = vadd.f32 %v1501, 1.0
    %v1504 = vadd.f32 %v1502, 1.0
    %v1505 = vmul.f32 %v1503, 0.5
    %v1506 = vmul.f32 %v1504, 0.5
    %v1507 = vmul.f32 %v1497, %v1505
    %v1508 = vmul.f32 %v1498, %v1506
    %v1509 = vld [vmem:[%s71] sm:$0x1]
    %v1510 = vld [vmem:[#allocation5] sm:$0x1]
    %1511 = vxpose.xlu0.b32.start [1/16] %v1507, 128
    %1512 = vxpose.xlu0.b32.cont [2/16] %v1508, 128
    %1513 = vxpose.xlu0.b32.cont [3/16] 0.0, 128
    %1514 = vxpose.xlu0.b32.cont [4/16] 0.0, 128
    %1515 = vxpose.xlu0.b32.cont [5/16] 0.0, 128
    %1516 = vxpose.xlu0.b32.cont [6/16] 0.0, 128
    %1517 = vxpose.xlu0.b32.cont [7/16] 0.0, 128
    %1518 = vxpose.xlu0.b32.cont [8/16] 0.0, 128
    %1519 = vxpose.xlu0.b32.cont [9/16] 0.0, 128
    %1520 = vxpose.xlu0.b32.cont [10/16] 0.0, 128
    %1521 = vxpose.xlu0.b32.cont [11/16] 0.0, 128
    %1522 = vxpose.xlu0.b32.cont [12/16] 0.0, 128
    %1523 = vxpose.xlu0.b32.cont [13/16] 0.0, 128
    %1524 = vxpose.xlu0.b32.cont [14/16] 0.0, 128
    %1525 = vxpose.xlu0.b32.cont [15/16] 0.0, 128
    %1526 = vxpose.xlu0.b32.end [16/16] 0.0, 128
    %v1527 = vpop.trf.xlu0
    %v1528 = vpop.trf.xlu0
    %v1529 = vpop.trf.xlu0
    %v1530 = vpop.trf.xlu0
    %v1531 = vpop.trf.xlu0
    %v1532 = vpop.trf.xlu0
    %v1533 = vpop.trf.xlu0
    %v1534 = vpop.trf.xlu0
    %v1535 = vpop.trf.xlu0
    %v1536 = vpop.trf.xlu0
    %v1537 = vpop.trf.xlu0
    %v1538 = vpop.trf.xlu0
    %v1539 = vpop.trf.xlu0
    %v1540 = vpop.trf.xlu0
    %v1541 = vpop.trf.xlu0
    %v1542 = vpop.trf.xlu0
    %v1543 = vpack.c.bf16 %v1528, %v1527
    %v1544 = vpack.c.bf16 %v1530, %v1529
    %1546 = vset.pattern.permute.xlu0 0
    %1547 = vperm.xlu0 %1546, %v1510
    %v1548 = vpop.permute.xlu0 %1547
    %v1550 = vperm.slane %v1548, 0
    %v1552 = vsel %vm427, %v1509, 0
    %1554 = vmatpush.bf16.msra.mxu0 0
    %1555 = vmatpush.bf16.msra.mxu0 0
    %1556 = vmatpush.bf16.msra.mxu0 0
    %1557 = vmatpush.bf16.msra.mxu0 0
    %1558 = vmatpush.bf16.msra.mxu0 0
    %1559 = vmatpush.bf16.msra.mxu0 0
    %1560 = vmatpush.bf16.msra.mxu0 %v1544
    %1561 = vmatpush.bf16.msra.mxu0 %v1543
    %1562 = vmatmul.bf16.gmra.mxu0 %v1552
    %v1563 = vpop.f32.mrf.mxu0
    %v1564 = vadd.f32 %v1550, %v1563
    %v1565 = vpop.f32.mrf.mxu0
    %1566 = vdwg.mxu0
    %v1567 = vld [vmem:[%s27] sm:$0x1]
    %v1568 = vperm.slane %v1567, 0
    %vm1569 = vcmp.eq.s32.totalorder %v913, %v1568
    %v1570 = vsel %vm1569, 1, 0
    %v1571 = vcvt.s32.f32 %v1570
    %v1572 = vperm.slane %v1564, 0
    %v1573 = vsel %vm1569, %v1572, -1e+30
    %vm1574 = vcmask 84992
    %v1575 = vsel %vm1574, %v1573, -inf
    %1576 = vmax.xlane.f32.xlu0 %v1575
    %v1577 = vpop.xlane.xlu0 %1576
    %v1578 = vmul.f32 %v1571, %v1577
    %v1579 = vsel %vm1574, %v1578, 0.0
    %v1580 = vrot.slane %v1579, 4
    %v1581 = vadd.f32 %v1579, %v1580
    %v1582 = vrot.slane %v1581, 2
    %v1583 = vadd.f32 %v1581, %v1582
    %v1584 = vrot.slane %v1583, 1
    %v1585 = vadd.f32 %v1583, %v1584
    %v1586 = vsub.f32 %v1564, %v1585
    %v1587 = vmul.f32 %v1586, 1.442695
    %v1588 = vpow.pop %v1587
    %v1589 = vperm.slane %v1588, 0
    %v1590 = vmul.f32 %v1571, %v1589
    %v1591 = vsel %vm1574, %v1590, 0.0
    %1592 = vadd.xlane.f32.xlu0 %v1591
    %v1593 = vpop.xlane.xlu0 %1592
    %v1594 = vmul.f32 %v1571, %v1593
    %v1595 = vsel %vm1574, %v1594, 0.0
    %v1596 = vrot.slane %v1595, 4
    %v1597 = vadd.f32 %v1595, %v1596
    %v1598 = vrot.slane %v1597, 2
    %v1599 = vadd.f32 %v1597, %v1598
    %v1600 = vrot.slane %v1599, 1
    %v1601 = vadd.f32 %v1599, %v1600
    %v1602 = vrcp.pop %v1601
    %v1603 = vmul.f32 %v1601, %v1602
    %v1604 = vsub.f32 1.0, %v1603
    %v1605 = vmul.f32 %v1602, %v1604
    %v1606 = vadd.f32 %v1602, %v1605
    %vm1607 = vweird.f32 %v1601
    %vm1608 = vweird.f32 %v1602
    %vm1609 = vmor %vm1607, %vm1608
    %v1610 = vsel %vm1609, %v1602, %v1606
    %v1611 = vand.u32 2147483647, %v1601
    %vm1612 = vcmp.eq.f32.partialorder %v1611, 8.507059e+37
    %v1613 = vand.u32 %v1601, 2147483648
    %v1614 = vor.u32 1.1754944e-38, %v1613
    %v1615 = vsel %vm1612, %v1614, %v1610
    %v1616 = vmul.f32 %v1588, %v1615
    %vm1617 = vcmask 81920
    %1618 = vst.msk [vmem:[#allocation31] sm:$0x1] %vm1617, %v1616
    %v1619 = vld [vmem:[%s29] sm:$0x1]
    %v1621 = vperm.slane %v1619, 0
    %v1623 = vmul.f32 %v1571, %v1621
    %v1624 = vsel %vm1574, %v1623, 0.0
    %1625 = vadd.xlane.f32.xlu0 %v1624
    %v1626 = vpop.xlane.xlu0 %1625
    %vm1627 = vcmask 89088
    %v1629 = vsel %vm1627, %v1623, 0
    %vm1631 = vcmask 1042432
    %v1633 = vsel %vm1631, %v721, 0
    %1635 = vmatpush.msra.mxu0 0.0
    %1636 = vmatpush.msra.mxu0 0.0
    %1637 = vmatpush.msra.mxu0 0.0
    %1638 = vmatpush.msra.mxu0 0.0
    %1639 = vmatpush.msra.mxu0 0.0
    %1640 = vmatpush.msra.mxu0 0.0
    %1641 = vmatpush.msra.mxu0 0.0
    %1642 = vmatpush.msra.mxu0 0.0
    %1643 = vmatpush.msra.mxu0 0.0
    %1644 = vmatpush.msra.mxu0 0.0
    %1645 = vmatpush.msra.mxu0 0.0
    %1646 = vmatpush.msra.mxu0 0.0
    %1647 = vmatpush.msra.mxu0 0.0
    %1648 = vmatpush.msra.mxu0 0.0
    %1649 = vmatpush.msra.mxu0 %v1633
    %1650 = vmatpush.msra.mxu0 %v718
    %1651 = vmatmul.f32.gmra.mxu0 %v1629
    %v1652 = vpop.f32.mrf.mxu0
    %v1653 = vadd.f32 0.0, %v1652
    %1654 = vdwg.mxu0
    %v1655 = vmax.f32 %v1626, 1.0
    %v1656 = vrcp.pop %v1655
    %v1657 = vmul.f32 %v1655, %v1656
    %v1658 = vsub.f32 1.0, %v1657
    %v1659 = vmul.f32 %v1656, %v1658
    %v1660 = vadd.f32 %v1656, %v1659
    %vm1661 = vweird.f32 %v1655
    %vm1662 = vweird.f32 %v1656
    %vm1663 = vmor %vm1661, %vm1662
    %v1664 = vsel %vm1663, %v1656, %v1660
    %v1665 = vand.u32 2147483647, %v1655
    %vm1666 = vcmp.eq.f32.partialorder %v1665, 8.507059e+37
    %v1667 = vand.u32 %v1655, 2147483648
    %v1668 = vor.u32 1.1754944e-38, %v1667
    %v1669 = vsel %vm1666, %v1668, %v1664
    %v1670 = vmul.f32 %v1653, %v1669
    %v1671 = vld [vmem:[#allocation21] sm:$0xf]
    %v1672 = vld [vmem:[#allocation21 + $0x4] sm:$0xf]
    %v1673 = vld [vmem:[#allocation21 + $0x8] sm:$0xf]
    %v1674 = vld [vmem:[#allocation21 + $0xc] sm:$0xf]
    %v1675 = vld [vmem:[#allocation23] sm:$0xf]
    %v1676 = vld [vmem:[#allocation23 + $0x4] sm:$0xf]
    %v1677 = vld [vmem:[#allocation23 + $0x8] sm:$0xf]
    %v1678 = vld [vmem:[#allocation23 + $0xc] sm:$0xf]
    %v1683 = vunpack.c.l.b16 %v1675
    %v1684 = vunpack.c.l.b16 %v1676
    %v1685 = vunpack.c.l.b16 %v1677
    %v1686 = vunpack.c.l.b16 %v1678
    %v1687 = vpack.c.b16 %v1684, %v1683
    %v1688 = vpack.c.b16 %v1686, %v1685
    %1691 = vmatpush.bf16.msra.mxu0 0
    %1692 = vmatpush.bf16.msra.mxu0 0
    %1693 = vmatpush.bf16.msra.mxu0 0
    %1694 = vmatpush.bf16.msra.mxu0 0
    %1695 = vmatpush.bf16.msra.mxu0 0
    %1696 = vmatpush.bf16.msra.mxu0 0
    %1697 = vmatpush.bf16.msra.mxu0 %v1688
    %1698 = vmatpush.bf16.msra.mxu0 %v1687
    %1699 = vmatmul.bf16.gmra.mxu0 %v987
    %v1700 = vpop.f32.mrf.mxu0
    %v1701 = vadd.f32 0.0, %v1700
    %v1702 = vpop.f32.mrf.mxu0
    %1703 = vdwg.mxu0
    %v1708 = vunpack.c.l.b16 %v1671
    %v1709 = vunpack.c.l.b16 %v1672
    %v1710 = vunpack.c.l.b16 %v1673
    %v1711 = vunpack.c.l.b16 %v1674
    %v1712 = vpack.c.b16 %v1709, %v1708
    %v1713 = vpack.c.b16 %v1711, %v1710
    %1716 = vmatpush.bf16.msra.mxu0 0
    %1717 = vmatpush.bf16.msra.mxu0 0
    %1718 = vmatpush.bf16.msra.mxu0 0
    %1719 = vmatpush.bf16.msra.mxu0 0
    %1720 = vmatpush.bf16.msra.mxu0 0
    %1721 = vmatpush.bf16.msra.mxu0 0
    %1722 = vmatpush.bf16.msra.mxu0 %v1713
    %1723 = vmatpush.bf16.msra.mxu0 %v1712
    %1724 = vmatmul.bf16.gmra.mxu0 %v741
    %v1725 = vpop.f32.mrf.mxu0
    %v1726 = vadd.f32 %v1701, %v1725
    %v1727 = vpop.f32.mrf.mxu0
    %1728 = vdwg.mxu0
    %v1729 = vld [vmem:[#allocation24] sm:$0xf]
    %v1730 = vld [vmem:[#allocation24 + $0x4] sm:$0xf]
    %v1731 = vld [vmem:[#allocation24 + $0x8] sm:$0xf]
    %v1732 = vld [vmem:[#allocation24 + $0xc] sm:$0xf]
    %v1737 = vunpack.c.l.b16 %v1729
    %v1738 = vunpack.c.l.b16 %v1730
    %v1739 = vunpack.c.l.b16 %v1731
    %v1740 = vunpack.c.l.b16 %v1732
    %v1741 = vpack.c.b16 %v1738, %v1737
    %v1742 = vpack.c.b16 %v1740, %v1739
    %1745 = vmatpush.bf16.msra.mxu0 0
    %1746 = vmatpush.bf16.msra.mxu0 0
    %1747 = vmatpush.bf16.msra.mxu0 0
    %1748 = vmatpush.bf16.msra.mxu0 0
    %1749 = vmatpush.bf16.msra.mxu0 0
    %1750 = vmatpush.bf16.msra.mxu0 0
    %1751 = vmatpush.bf16.msra.mxu0 %v1742
    %1752 = vmatpush.bf16.msra.mxu0 %v1741
    %1753 = vmatmul.bf16.gmra.mxu0 %v1397
    %v1754 = vpop.f32.mrf.mxu0
    %v1755 = vadd.f32 0.0, %v1754
    %v1756 = vpop.f32.mrf.mxu0
    %1757 = vdwg.mxu0
    %v1758 = vadd.f32 %v1726, %v1755
    %v1759 = vpack.c.bf16 %v1670, %v1670
    %v1760 = vld [vmem:[#allocation26] sm:$0xf]
    %v1761 = vld [vmem:[#allocation26 + $0x4] sm:$0xf]
    %v1762 = vld [vmem:[#allocation26 + $0x8] sm:$0xf]
    %v1763 = vld [vmem:[#allocation26 + $0xc] sm:$0xf]
    %v1768 = vunpack.c.l.b16 %v1760
    %v1769 = vunpack.c.l.b16 %v1761
    %v1770 = vunpack.c.l.b16 %v1762
    %v1771 = vunpack.c.l.b16 %v1763
    %v1772 = vpack.c.b16 %v1769, %v1768
    %v1773 = vpack.c.b16 %v1771, %v1770
    %v1777 = vsel %vm427, %v1759, 0
    %1779 = vmatpush.bf16.msra.mxu0 0
    %1780 = vmatpush.bf16.msra.mxu0 0
    %1781 = vmatpush.bf16.msra.mxu0 0
    %1782 = vmatpush.bf16.msra.mxu0 0
    %1783 = vmatpush.bf16.msra.mxu0 0
    %1784 = vmatpush.bf16.msra.mxu0 0
    %1785 = vmatpush.bf16.msra.mxu0 %v1773
    %1786 = vmatpush.bf16.msra.mxu0 %v1772
    %1787 = vmatmul.bf16.gmra.mxu0 %v1777
    %v1788 = vpop.f32.mrf.mxu0
    %v1789 = vadd.f32 0.0, %v1788
    %v1790 = vpop.f32.mrf.mxu0
    %1791 = vdwg.mxu0
    %v1792 = vadd.f32 %v1758, %v1789
    %v1793 = vld [vmem:[%s83] sm:$0x1]
    %v1795 = vperm.slane %v1793, 0
    %v1797 = vadd.f32 %v1792, %v1795
    %v1798 = vmul.f32 %v1797, 0.5
    %v1799 = vtanh.pop %v1798
    %v1800 = vadd.f32 %v1799, 1.0
    %v1801 = vmul.f32 %v1800, 0.5
    %v1802 = vmul.f32 %v1797, %v1801
    %v1803 = vpack.c.bf16 %v1802, %v1802
    %v1804 = vld [vmem:[%s85] sm:$0xf]
    %v1805 = vld [vmem:[%s85 + $0x4] sm:$0xf]
    %v1806 = vld [vmem:[%s85 + $0x8] sm:$0xf]
    %v1807 = vld [vmem:[%s85 + $0xc] sm:$0xf]
    %v1808 = vld [vmem:[%s87] sm:$0x1]
    %v1810 = vperm.slane %v1808, 0
    %v1816 = vunpack.c.l.b16 %v1804
    %v1817 = vunpack.c.l.b16 %v1805
    %v1818 = vunpack.c.l.b16 %v1806
    %v1819 = vunpack.c.l.b16 %v1807
    %v1820 = vpack.c.b16 %v1817, %v1816
    %v1821 = vpack.c.b16 %v1819, %v1818
    %v1825 = vsel %vm427, %v1803, 0
    %1827 = vmatpush.bf16.msra.mxu0 0
    %1828 = vmatpush.bf16.msra.mxu0 0
    %1829 = vmatpush.bf16.msra.mxu0 0
    %1830 = vmatpush.bf16.msra.mxu0 0
    %1831 = vmatpush.bf16.msra.mxu0 0
    %1832 = vmatpush.bf16.msra.mxu0 0
    %1833 = vmatpush.bf16.msra.mxu0 %v1821
    %1834 = vmatpush.bf16.msra.mxu0 %v1820
    %1835 = vmatmul.bf16.gmra.mxu0 %v1825
    %v1836 = vpop.f32.mrf.mxu0
    %v1837 = vadd.f32 %v1810, %v1836
    %v1838 = vpop.f32.mrf.mxu0
    %1839 = vdwg.mxu0
    %vm1840 = vcmask 27648
    %1841 = vst.msk [vmem:[#allocation33] sm:$0xf] %vm1840, %v1837
    // Predicated region
    $region230: #{tpu_custom_call.1} parent=1 // pred_check
      _
    $region231: #{tpu_custom_call.1} parent=1 // pred_check_branch
      %1843 = sbr.rel (0) target = $region233
    $region232: #{tpu_custom_call.1} parent=1 // pred_region
      %1845 = vsyncadd [#allocation8], 0
      %s1847 = sshll.u32 [#allocation27], 4
      %s1848 = int_to_ptr.vmem [resolvable:$true] %s1847
      %s1849 = sshll.u32 %s89, 4
      %s1850 = int_to_ptr.hbm [resolvable:$true] %s1849
      %1852 = dma.vmem_to_hbm [thread:$0]  %s1848, 16, %s1850, [#allocation8]
    $region233: #{tpu_custom_call.1} parent=1 // pred_fallthru
      _
    // Predicated region
    $region234: #{tpu_custom_call.1} parent=1 // pred_check
      _
    $region235: #{tpu_custom_call.1} parent=1 // pred_check_branch
      %1854 = sbr.rel (0) target = $region237
    $region236: #{tpu_custom_call.1} parent=1 // pred_region
      %1856 = vsyncadd [#allocation29], 0
      %s1858 = sshll.u32 [#allocation28], 4
      %s1859 = int_to_ptr.vmem [resolvable:$true] %s1858
      %s1860 = sshll.u32 %s91, 4
      %s1861 = int_to_ptr.hbm [resolvable:$true] %s1860
      %1863 = dma.vmem_to_hbm [thread:$0]  %s1859, 64, %s1861, [#allocation29]
    $region237: #{tpu_custom_call.1} parent=1 // pred_fallthru
      _
    // Predicated region
    $region238: #{tpu_custom_call.1} parent=1 // pred_check
      _
    $region239: #{tpu_custom_call.1} parent=1 // pred_check_branch
      %1865 = sbr.rel (0) target = $region241
    $region240: #{tpu_custom_call.1} parent=1 // pred_region
      %1867 = vsyncadd [#allocation29], 0
      %s1869 = sshll.u32 [#allocation30], 4
      %s1870 = int_to_ptr.vmem [resolvable:$true] %s1869
      %s1871 = sshll.u32 %s93, 4
      %s1872 = int_to_ptr.hbm [resolvable:$true] %s1871
      %1874 = dma.vmem_to_hbm [thread:$0]  %s1870, 16, %s1872, [#allocation29]
    $region241: #{tpu_custom_call.1} parent=1 // pred_fallthru
      _
    // Predicated region
    $region242: #{tpu_custom_call.1} parent=1 // pred_check
      _
    $region243: #{tpu_custom_call.1} parent=1 // pred_check_branch
      %1876 = sbr.rel (0) target = $region245
    $region244: #{tpu_custom_call.1} parent=1 // pred_region
      %1878 = vsyncadd [#allocation32], 0
      %s1880 = sshll.u32 [#allocation31], 4
      %s1881 = int_to_ptr.vmem [resolvable:$true] %s1880
      %s1882 = sshll.u32 %s95, 4
      %s1883 = int_to_ptr.hbm [resolvable:$true] %s1882
      %1885 = dma.vmem_to_hbm [thread:$0]  %s1881, 16, %s1883, [#allocation32]
    $region245: #{tpu_custom_call.1} parent=1 // pred_fallthru
      _
    // Predicated region
    $region246: #{tpu_custom_call.1} parent=1 // pred_check
      _
    $region247: #{tpu_custom_call.1} parent=1 // pred_check_branch
      %1887 = sbr.rel (0) target = $region249
    $region248: #{tpu_custom_call.1} parent=1 // pred_region
      %1889 = vsyncadd [#allocation32], 0
      %s1891 = sshll.u32 [#allocation33], 4
      %s1892 = int_to_ptr.vmem [resolvable:$true] %s1891
      %s1893 = sshll.u32 %s97, 4
      %s1894 = int_to_ptr.hbm [resolvable:$true] %s1893
      %1896 = dma.vmem_to_hbm [thread:$0]  %s1892, 64, %s1894, [#allocation32]
    $region249: #{tpu_custom_call.1} parent=1 // pred_fallthru
      _
    // Predicated region
    $region250: #{tpu_custom_call.1} parent=1 // pred_check
      _
    $region251: #{tpu_custom_call.1} parent=1 // pred_check_branch
      %1898 = sbr.rel (0) target = $region253
    $region252: #{tpu_custom_call.1} parent=1 // pred_region
      %1900 = dma.done [#allocation8], 16
    $region253: #{tpu_custom_call.1} parent=1 // pred_fallthru
      _
    // Predicated region
    $region254: #{tpu_custom_call.1} parent=1 // pred_check
      _
    $region255: #{tpu_custom_call.1} parent=1 // pred_check_branch
      %1902 = sbr.rel (0) target = $region257
    $region256: #{tpu_custom_call.1} parent=1 // pred_region
      %1904 = dma.done [#allocation29], 64
    $region257: #{tpu_custom_call.1} parent=1 // pred_fallthru
      _
    // Predicated region
    $region258: #{tpu_custom_call.1} parent=1 // pred_check
      _
    $region259: #{tpu_custom_call.1} parent=1 // pred_check_branch
      %1906 = sbr.rel (0) target = $region261
    $region260: #{tpu_custom_call.1} parent=1 // pred_region
      %1908 = dma.done [#allocation29], 16
    $region261: #{tpu_custom_call.1} parent=1 // pred_fallthru
      _
    // Predicated region
    $region262: #{tpu_custom_call.1} parent=1 // pred_check
      _
    $region263: #{tpu_custom_call.1} parent=1 // pred_check_branch
      %1910 = sbr.rel (0) target = $region265
    $region264: #{tpu_custom_call.1} parent=1 // pred_region
      %1912 = dma.done [#allocation32], 16
    $region265: #{tpu_custom_call.1} parent=1 // pred_fallthru
      _
    // Predicated region
    $region266: #{tpu_custom_call.1} parent=1 // pred_check
      _
    $region267: #{tpu_custom_call.1} parent=1 // pred_check_branch
      %1914 = sbr.rel (0) target = $region269
    $region268: #{tpu_custom_call.1} parent=1 // pred_region
      %1916 = dma.done [#allocation32], 64
    $region269: #{tpu_custom_call.1} parent=1 // pred_fallthru
      _
    %1917 = vsyncpa [#allocation7], 1
    %1918 = vsyncpa [#allocation10], 1
    %1919 = vsyncpa [#allocation13], 1
    %1920 = vsyncpa [#allocation16], 1
    %1921 = vsyncpa [#allocation19], 1
    %1922 = vsyncpa [#allocation22], 1
    %1923 = vsyncpa [#allocation25], 1
    %1924 = vsyncpa [#allocation8], 1
    %1925 = vsyncpa [#allocation29], 1
    %1926 = vsyncpa [#allocation32], 1

</llo_original>
